<compile_context>
chip_gen: v7x
topology: tpu7x:2x2x1
jax: 0.10.0
libtpu: 0.0.40
codegen_flags: <defaults>
</compile_context>

<pallas_src>
import math

import jax
import jax.numpy as jnp
from jax.experimental import pallas as pl
from jax.experimental.pallas import tpu as pltpu


# Per-generation tunables.
_VPU_EXPAND_MAX_CIN = 8     # expand conv: VPU broadcast-FMA below this Cin
_BF16_MIN_CEXP = 64         # bf16 MXU operands only when contraction >= this


def _tpu_vmem_bytes():
    phys = 128 * 1024 * 1024
    try:
        info = pltpu.get_tpu_info()
        phys = int(getattr(info, "vmem_capacity_bytes", phys))
    except Exception:
        pass
    return phys


def _choose_row_tiling(H, W, Cexp, d, rows_per_tile=None):
    """Output rows per tile R (R*W % 128 == 0 when tiled) and window rows Rw."""
    g = 128 // math.gcd(W, 128)          # row granule for 128-lane alignment
    if rows_per_tile is None:
        phys = _tpu_vmem_bytes()
        # ~5 live f32 (Cexp, window) temporaries per step must fit the budget.
        budget = (12 << 20) if phys <= (64 << 20) else (28 << 20)
        per_row = 5 * Cexp * W * 4
        rows_per_tile = max(1, budget // per_row - 2 * d)
    R = max(1, min(int(rows_per_tile), H))
    R = (R // g) * g
    if R <= 0 or R >= H:
        R, T = H, 1
    else:
        T = -(-H // R)
    # Window = d-row top halo + R centre rows + d-row bottom halo, padded so the
    # lane extent Rw*W is a multiple of 128 (aligned rolls / loads).  Skip the
    # alignment pad when it would be absurd (odd-W small-P layers -> TODO above).
    Rw = R + 2 * d
    extra = (-Rw) % g
    if extra and extra * W <= max(256, (Rw * W) // 2):
        Rw += extra
    return R, T, Rw


def _roll_lanes(x, shift, use_tpu_roll):
    """roll along the lane (last) axis of a 2-D value; jnp.roll semantics."""
    n = x.shape[-1]
    s = shift % n
    if s == 0:
        return x
    if use_tpu_roll:
        return pltpu.roll(x, shift=s, axis=1)      # XLU rotate (positive axis!)
    return jnp.roll(x, s, axis=1)                  # portability fallback


def _make_kernel(W, R, Rw, Cin, Cexp, Coup, dilation, use_res, use_tpu_roll):
    d = dilation
    winP = Rw * W                 # lanes per window (halo included)
    outP = R * W                  # lanes actually written
    c0 = d * W                    # flat offset of the first centre row

    def kernel(x_ref, m_ref, w1_ref, b1_ref, wdw_ref, b2_ref, w3_ref, b3_ref,
               o_ref):
        x = x_ref[0, 0]                                   # (Cin, winP) f32

        # ---- 1x1 expand conv (+folded BN) + ReLU ---------------------------
        if Cin <= _VPU_EXPAND_MAX_CIN:
            # Tiny contraction: VPU broadcast-FMA outer products, skip the
            # K-starved MXU matmul.
            h = x[0:1, :] * w1_ref[:, 0:1]
            for c in range(1, Cin):
                h = h + x[c:c + 1, :] * w1_ref[:, c:c + 1]
        else:
            h = jnp.dot(w1_ref[...], x.astype(w1_ref.dtype),
                        preferred_element_type=jnp.float32)
        h = jnp.maximum(h + b1_ref[...], 0.0)             # (Cexp, winP) f32

        # ---- 3x3 depthwise conv, dilation d, zero-pad d (+BN) + ReLU --------
        # Factored taps: 2 column rolls + 2 row rolls, masks applied once per
        # shifted copy / per off-centre row-sum.  Masks are {0,1} f32 inputs.
        w = wdw_ref[...]                                  # (Cexp, 9), t = kh*3+kw
        mcl = m_ref[0, 0:1, :]                            # source col - d valid
        mcr = m_ref[0, 1:2, :]                            # source col + d valid
        mru = m_ref[0, 2:3, :]                            # source row - d valid
        mrd = m_ref[0, 3:4, :]                            # source row + d valid

        hM = _roll_lanes(h, d, use_tpu_roll) * mcl        # h[p - d]
        hP = _roll_lanes(h, winP - d, use_tpu_roll) * mcr  # h[p + d]

        acc = hM * w[:, 3:4] + h * w[:, 4:5] + hP * w[:, 5:6]   # centre row
        top = hM * w[:, 0:1] + h * w[:, 1:2] + hP * w[:, 2:3]
        acc = acc + _roll_lanes(top, d * W, use_tpu_roll) * mru
        bot = hM * w[:, 6:7] + h * w[:, 7:8] + hP * w[:, 8:9]
        acc = acc + _roll_lanes(bot, winP - d * W, use_tpu_roll) * mrd
        h2 = jnp.maximum(acc + b2_ref[...], 0.0)          # (Cexp, winP) f32

        # ---- 1x1 project conv (+folded BN) [+ residual], centre rows only ---
        h2c = h2[:, c0:c0 + outP]                         # static slice
        y = jnp.dot(w3_ref[...], h2c.astype(w3_ref.dtype),
                    preferred_element_type=jnp.float32)   # (Coup, outP) f32
        y = y + b3_ref[...]
        if use_res:                                       # static branch
            y = y + x[:, c0:c0 + outP]
        o_ref[0] = y.astype(o_ref.dtype)                  # lane-dense store

    return kernel


def inverted_residual_pallas(x_nchw, w1, b1, wdw, b2, w3, b3,
                             stride, dilation, use_res,
                             rows_per_tile=None, out_dtype=jnp.float32):
    """InvertedResidual forward (eval-mode BN folded into weights/biases).

    x_nchw : (N, Cin, H, W) f32
    w1 (Cexp, Cin), b1 (Cexp, 1)   -- expand 1x1 conv (+BN)
    wdw (Cexp, 9),  b2 (Cexp, 1)   -- 3x3 depthwise conv (+BN), tap = kh*3+kw
    w3 (Coup, Cexp), b3 (Coup, 1)  -- project 1x1 conv (+BN)
    Returns (N, Coup, Ho, Wo) in NCHW.
    """
    N, Cin, H, W = x_nchw.shape
    Cexp = w1.shape[0]
    Coup = w3.shape[0]
    d = dilation
    assert stride in (1, 2)
    assert (not use_res) or (stride == 1 and Cin == Coup)

    R, T, Rw = _choose_row_tiling(H, W, Cexp, d, rows_per_tile)
    Hr = T * R
    winP = Rw * W
    outP = R * W

    # ---- wrapper-side layout glue (cheap, only Cin channels) ----------------
    # Pad rows so every tile's window exists, then gather the overlapping
    # per-tile windows once; the kernel stays free of dynamic lane slicing and
    # halo rows are recomputed rather than re-fetched.
    Hp = (T - 1) * R + Rw
    x_pad = jnp.pad(x_nchw, ((0, 0), (0, 0), (d, Hp - H - d), (0, 0)))
    row_idx = jnp.arange(T)[:, None] * R + jnp.arange(Rw)[None, :]      # (T, Rw)
    x_win = x_pad[:, :, row_idx, :]                                     # (N,Cin,T,Rw,W)
    x_win = jnp.moveaxis(x_win, 2, 1).reshape(N, T, Cin, winP)

    # Precomputed {0,1} source-validity masks (real rows live at [d, d+H)):
    # avoids in-kernel iota / integer divide in the VALU-bound depthwise.
    arow = jnp.arange(Hp)
    col = jnp.arange(W)
    mcl = jnp.broadcast_to((col >= d)[None, :], (Hp, W))                # col - d ok
    mcr = jnp.broadcast_to((col + d < W)[None, :], (Hp, W))             # col + d ok
    mru = jnp.broadcast_to(((arow >= 2 * d) & (arow < 2 * d + H))[:, None],
                           (Hp, W))                                     # row - d ok
    mrd = jnp.broadcast_to((arow < H)[:, None], (Hp, W))                # row + d ok
    masks = jnp.stack([mcl, mcr, mru, mrd], axis=0).astype(jnp.float32)  # (4,Hp,W)
    masks = jnp.moveaxis(masks[:, row_idx, :], 1, 0).reshape(T, 4, winP)

    # bf16 MXU operands only when the contraction is big enough to benefit.
    mm_dtype = jnp.bfloat16 if Cexp >= _BF16_MIN_CEXP else jnp.float32
    w1_k = (w1.astype(jnp.float32) if Cin <= _VPU_EXPAND_MAX_CIN
            else w1.astype(mm_dtype))
    w3_k = w3.astype(mm_dtype)

    # Per-step VMEM estimate -> per-generation limit with pipelining headroom.
    est = (2 * (Cin * winP + 4 * winP + Coup * outP) * 4     # double-buffered blocks
           + 6 * Cexp * winP * 4                             # live f32 temporaries
           + 2 * (Cexp * (Cin + 9 + 2) + Coup * (Cexp + 1)) * 4)
    phys = _tpu_vmem_bytes()
    vmem_limit = max(int(1.5 * est), 32 * 1024 * 1024)
    vmem_limit = min(vmem_limit, int(0.5 * phys))
    vmem_limit = max(vmem_limit, min(int(1.25 * est), phys))

    def _call(use_tpu_roll):
        kernel = _make_kernel(W, R, Rw, Cin, Cexp, Coup, d, use_res,
                              use_tpu_roll)
        return pl.pallas_call(
            kernel,
            out_shape=jax.ShapeDtypeStruct((N, Coup, Hr * W), out_dtype),
            grid_spec=pltpu.PrefetchScalarGridSpec(
                num_scalar_prefetch=0,
                grid=(N, T),
                in_specs=[
                    pl.BlockSpec((1, 1, Cin, winP), lambda n, t: (n, t, 0, 0)),
                    pl.BlockSpec((1, 4, winP), lambda n, t: (t, 0, 0)),
                    pl.BlockSpec((Cexp, Cin), lambda n, t: (0, 0)),
                    pl.BlockSpec((Cexp, 1), lambda n, t: (0, 0)),
                    pl.BlockSpec((Cexp, 9), lambda n, t: (0, 0)),
                    pl.BlockSpec((Cexp, 1), lambda n, t: (0, 0)),
                    pl.BlockSpec((Coup, Cexp), lambda n, t: (0, 0)),
                    pl.BlockSpec((Coup, 1), lambda n, t: (0, 0)),
                ],
                out_specs=pl.BlockSpec((1, Coup, outP), lambda n, t: (n, 0, t)),
            ),
            compiler_params=pltpu.CompilerParams(
                dimension_semantics=("parallel", "parallel"),
                vmem_limit_bytes=int(vmem_limit)),
        )(x_win, masks, w1_k, b1, wdw, b2, w3_k, b3)

    try:
        y_flat = _call(True)                 # primary path: XLU rotates
        jax.block_until_ready(y_flat)
    except Exception:
        # Portability fallback (e.g. emulation without a pltpu.roll rule):
        # identical math, jnp.roll lowers to lane slices + concatenate.
        y_flat = _call(False)

    y = y_flat.reshape(N, Coup, Hr, W)[:, :, :H, :]
    if stride == 2:
        # stride-2 output == stride-1 output at even anchors (pointwise convs,
        # per-channel BN and ReLU commute with spatial subsampling; pad == d).
        # TODO(synk): subsample inside the kernel before the project matmul.
        y = y[:, :, ::2, ::2]
    return y


# --------------------------- reference / self-test ---------------------------

def _reference(x_nchw, w1_pt, wdw_pt, w3_pt, bn1, bn2, bn3,
               stride, dilation, use_res, eps=1e-5):
    def bn_apply(x, p):
        gamma, beta, mean, var = p
        return (x - mean) / jnp.sqrt(var + eps) * gamma + beta

    x_nhwc = jnp.transpose(x_nchw, (0, 2, 3, 1))
    dn = ("NHWC", "HWIO", "NHWC")
    Cexp = w1_pt.shape[0]
    h = jax.lax.conv_general_dilated(
        x_nhwc, jnp.transpose(w1_pt, (2, 3, 1, 0)), (1, 1), "VALID",
        dimension_numbers=dn)
    h = jax.nn.relu(bn_apply(h, bn1))
    h = jax.lax.conv_general_dilated(
        h, jnp.transpose(wdw_pt, (2, 3, 1, 0)), (stride, stride),
        [(dilation, dilation), (dilation, dilation)],
        rhs_dilation=(dilation, dilation),
        dimension_numbers=dn, feature_group_count=Cexp)
    h = jax.nn.relu(bn_apply(h, bn2))
    h = jax.lax.conv_general_dilated(
        h, jnp.transpose(w3_pt, (2, 3, 1, 0)), (1, 1), "VALID",
        dimension_numbers=dn)
    y = bn_apply(h, bn3)
    if use_res:
        y = y + x_nhwc
    return jnp.transpose(y, (0, 3, 1, 2))


if __name__ == "__main__":
    eps = 1e-5

    def fold(gamma, beta, mean, var):
        s = gamma / jnp.sqrt(var + eps)
        return s, beta - mean * s

    def bn_params(k, C):
        k1, k2, k3, k4 = jax.random.split(k, 4)
        gamma = 1.0 + 0.1 * jax.random.normal(k1, (C,), jnp.float32)
        beta = 0.1 * jax.random.normal(k2, (C,), jnp.float32)
        mean = 0.1 * jax.random.normal(k3, (C,), jnp.float32)
        var = jax.random.uniform(k4, (C,), jnp.float32, minval=0.5, maxval=1.5)
        return gamma, beta, mean, var

    def run_case(key, *, N, inp, oup, H, W, stride, expand_ratio, dilation,
                 rows_per_tile):
        Cexp = inp * expand_ratio
        keys = jax.random.split(key, 7)
        x = jax.random.normal(keys[0], (N, inp, H, W), jnp.float32)
        w1_pt = jax.random.normal(keys[1], (Cexp, inp, 1, 1), jnp.float32) * 0.2
        wdw_pt = jax.random.normal(keys[2], (Cexp, 1, 3, 3), jnp.float32) * 0.2
        w3_pt = jax.random.normal(keys[3], (oup, Cexp, 1, 1), jnp.float32) * 0.2
        bn1 = bn_params(keys[4], Cexp)
        bn2 = bn_params(keys[5], Cexp)
        bn3 = bn_params(keys[6], oup)
        s1, sh1 = fold(*bn1)
        s2, sh2 = fold(*bn2)
        s3, sh3 = fold(*bn3)
        # Kernel-layout weights with BN folded in (plain-JAX glue).
        w1 = w1_pt[:, :, 0, 0] * s1[:, None]                         # (Cexp, Cin)
        wdw = (wdw_pt[:, 0, :, :] * s2[:, None, None]).reshape(Cexp, 9)
        w3 = w3_pt[:, :, 0, 0] * s3[:, None]                         # (Coup, Cexp)
        b1, b2, b3 = sh1[:, None], sh2[:, None], sh3[:, None]
        use_res = (stride == 1) and (inp == oup)

        y = inverted_residual_pallas(x, w1, b1, wdw, b2, w3, b3,
                                     stride, dilation, use_res,
                                     rows_per_tile=rows_per_tile)
        jax.block_until_ready(y)
        y_ref = _reference(x, w1_pt, wdw_pt, w3_pt, bn1, bn2, bn3,
                           stride, dilation, use_res)
        return float(jnp.max(jnp.abs(y - y_ref)))

    root = jax.random.PRNGKey(0)
    k1, k2, k3 = jax.random.split(root, 3)
    cases = [
        # tiled (T=2), VPU expand, residual
        dict(N=2, inp=4, oup=4, H=16, W=16, stride=1, expand_ratio=6,
             dilation=1, rows_per_tile=8),
        # untiled, MXU expand, residual, dilation=2
        dict(N=1, inp=16, oup=16, H=16, W=16, stride=1, expand_ratio=2,
             dilation=2, rows_per_tile=None),
        # tiled, stride-2 (even-anchor subsample), no residual
        dict(N=2, inp=4, oup=8, H=16, W=16, stride=2, expand_ratio=6,
             dilation=1, rows_per_tile=8),
    ]
    for k, cfg in zip((k1, k2, k3), cases):
        err = run_case(k, **cfg)
        assert err < 1e-2, f"max abs error too large: {err} for {cfg}"
    print("KERNEL_OK")
</pallas_src>

<mosaic_0001>
module attributes {stable_mosaic.version = 11 : i64} {
  func.func @kernel(%arg0: i32, %arg1: i32, %arg2: memref<1x1x4x256xf32, #tpu.memory_space<vmem>>, %arg3: memref<1x4x256xf32, #tpu.memory_space<vmem>>, %arg4: memref<24x4xf32, #tpu.memory_space<vmem>>, %arg5: memref<24x1xf32, #tpu.memory_space<vmem>>, %arg6: memref<24x9xf32, #tpu.memory_space<vmem>>, %arg7: memref<24x1xf32, #tpu.memory_space<vmem>>, %arg8: memref<4x24xf32, #tpu.memory_space<vmem>>, %arg9: memref<4x1xf32, #tpu.memory_space<vmem>>, %arg10: memref<1x4x128xf32, #tpu.memory_space<vmem>>) attributes {dimension_semantics = [#tpu.dimension_semantics<parallel>, #tpu.dimension_semantics<parallel>], iteration_bounds = array<i64: 2, 2>, scalar_prefetch = 0 : i64, scratch_operands = 0 : i64, tpu.core_type = #tpu.core_type<tc>, window_params = [{transform_indices = @transform_0, window_bounds = array<i64: 1, 1, 4, 256>}, {transform_indices = @transform_1, window_bounds = array<i64: 1, 4, 256>}, {pipeline_mode = #tpu.pipeline_mode<synchronous>, transform_indices = @transform_2, window_bounds = array<i64: 24, 4>}, {pipeline_mode = #tpu.pipeline_mode<synchronous>, transform_indices = @transform_3, window_bounds = array<i64: 24, 1>}, {pipeline_mode = #tpu.pipeline_mode<synchronous>, transform_indices = @transform_4, window_bounds = array<i64: 24, 9>}, {pipeline_mode = #tpu.pipeline_mode<synchronous>, transform_indices = @transform_5, window_bounds = array<i64: 24, 1>}, {pipeline_mode = #tpu.pipeline_mode<synchronous>, transform_indices = @transform_6, window_bounds = array<i64: 4, 24>}, {pipeline_mode = #tpu.pipeline_mode<synchronous>, transform_indices = @transform_7, window_bounds = array<i64: 4, 1>}, {transform_indices = @transform_8, window_bounds = array<i64: 1, 4, 128>}]} {
    %c0 = arith.constant 0 : index
    %c0_0 = arith.constant 0 : index
    %c0_1 = arith.constant 0 : index
    %c0_2 = arith.constant 0 : index
    %0 = vector.load %arg2[%c0, %c0_0, %c0_1, %c0_2] : memref<1x1x4x256xf32, #tpu.memory_space<vmem>>, vector<1x1x4x256xf32>
    %1 = vector.shape_cast %0 : vector<1x1x4x256xf32> to vector<4x256xf32>
    %2 = vector.extract_strided_slice %1 {offsets = [0, 0], sizes = [1, 256], strides = [1, 1]} : vector<4x256xf32> to vector<1x256xf32>
    %c0_3 = arith.constant 0 : index
    %c0_4 = arith.constant 0 : index
    %3 = vector.load %arg4[%c0_3, %c0_4] : memref<24x4xf32, #tpu.memory_space<vmem>>, vector<24x1xf32>
    %4 = vector.broadcast %2 : vector<1x256xf32> to vector<24x256xf32>
    %5 = vector.broadcast %3 : vector<24x1xf32> to vector<24x256xf32>
    %6 = arith.mulf %4, %5 : vector<24x256xf32>
    %7 = vector.extract_strided_slice %1 {offsets = [1, 0], sizes = [1, 256], strides = [1, 1]} : vector<4x256xf32> to vector<1x256xf32>
    %c0_5 = arith.constant 0 : index
    %c1 = arith.constant 1 : index
    %8 = vector.load %arg4[%c0_5, %c1] : memref<24x4xf32, #tpu.memory_space<vmem>>, vector<24x1xf32>
    %9 = vector.broadcast %7 : vector<1x256xf32> to vector<24x256xf32>
    %10 = vector.broadcast %8 : vector<24x1xf32> to vector<24x256xf32>
    %11 = arith.mulf %9, %10 : vector<24x256xf32>
    %12 = arith.addf %6, %11 : vector<24x256xf32>
    %13 = vector.extract_strided_slice %1 {offsets = [2, 0], sizes = [1, 256], strides = [1, 1]} : vector<4x256xf32> to vector<1x256xf32>
    %c0_6 = arith.constant 0 : index
    %c2 = arith.constant 2 : index
    %14 = vector.load %arg4[%c0_6, %c2] : memref<24x4xf32, #tpu.memory_space<vmem>>, vector<24x1xf32>
    %15 = vector.broadcast %13 : vector<1x256xf32> to vector<24x256xf32>
    %16 = vector.broadcast %14 : vector<24x1xf32> to vector<24x256xf32>
    %17 = arith.mulf %15, %16 : vector<24x256xf32>
    %18 = arith.addf %12, %17 : vector<24x256xf32>
    %19 = vector.extract_strided_slice %1 {offsets = [3, 0], sizes = [1, 256], strides = [1, 1]} : vector<4x256xf32> to vector<1x256xf32>
    %c0_7 = arith.constant 0 : index
    %c3 = arith.constant 3 : index
    %20 = vector.load %arg4[%c0_7, %c3] : memref<24x4xf32, #tpu.memory_space<vmem>>, vector<24x1xf32>
    %21 = vector.broadcast %19 : vector<1x256xf32> to vector<24x256xf32>
    %22 = vector.broadcast %20 : vector<24x1xf32> to vector<24x256xf32>
    %23 = arith.mulf %21, %22 : vector<24x256xf32>
    %24 = arith.addf %18, %23 : vector<24x256xf32>
    %c0_8 = arith.constant 0 : index
    %c0_9 = arith.constant 0 : index
    %25 = vector.load %arg5[%c0_8, %c0_9] : memref<24x1xf32, #tpu.memory_space<vmem>>, vector<24x1xf32>
    %26 = vector.broadcast %25 : vector<24x1xf32> to vector<24x256xf32>
    %27 = arith.addf %24, %26 : vector<24x256xf32>
    %cst = arith.constant 0.000000e+00 : f32
    %28 = vector.broadcast %cst : f32 to vector<24x256xf32>
    %29 = arith.maximumf %27, %28 : vector<24x256xf32>
    %c0_10 = arith.constant 0 : index
    %c0_11 = arith.constant 0 : index
    %30 = vector.load %arg6[%c0_10, %c0_11] : memref<24x9xf32, #tpu.memory_space<vmem>>, vector<24x9xf32>
    %c0_12 = arith.constant 0 : index
    %c0_13 = arith.constant 0 : index
    %c0_14 = arith.constant 0 : index
    %31 = vector.load %arg3[%c0_12, %c0_13, %c0_14] : memref<1x4x256xf32, #tpu.memory_space<vmem>>, vector<1x1x256xf32>
    %32 = vector.shape_cast %31 : vector<1x1x256xf32> to vector<1x256xf32>
    %c0_15 = arith.constant 0 : index
    %c1_16 = arith.constant 1 : index
    %c0_17 = arith.constant 0 : index
    %33 = vector.load %arg3[%c0_15, %c1_16, %c0_17] : memref<1x4x256xf32, #tpu.memory_space<vmem>>, vector<1x1x256xf32>
    %34 = vector.shape_cast %33 : vector<1x1x256xf32> to vector<1x256xf32>
    %c0_18 = arith.constant 0 : index
    %c2_19 = arith.constant 2 : index
    %c0_20 = arith.constant 0 : index
    %35 = vector.load %arg3[%c0_18, %c2_19, %c0_20] : memref<1x4x256xf32, #tpu.memory_space<vmem>>, vector<1x1x256xf32>
    %36 = vector.shape_cast %35 : vector<1x1x256xf32> to vector<1x256xf32>
    %c0_21 = arith.constant 0 : index
    %c3_22 = arith.constant 3 : index
    %c0_23 = arith.constant 0 : index
    %37 = vector.load %arg3[%c0_21, %c3_22, %c0_23] : memref<1x4x256xf32, #tpu.memory_space<vmem>>, vector<1x1x256xf32>
    %38 = vector.shape_cast %37 : vector<1x1x256xf32> to vector<1x256xf32>
    %c1_i32 = arith.constant 1 : i32
    %39 = tpu.dynamic_rotate %29 by %c1_i32 dim 1 : vector<24x256xf32>, i32 -> vector<24x256xf32>
    %40 = vector.broadcast %32 : vector<1x256xf32> to vector<24x256xf32>
    %41 = arith.mulf %39, %40 : vector<24x256xf32>
    %c255_i32 = arith.constant 255 : i32
    %42 = tpu.dynamic_rotate %29 by %c255_i32 dim 1 : vector<24x256xf32>, i32 -> vector<24x256xf32>
    %43 = vector.broadcast %34 : vector<1x256xf32> to vector<24x256xf32>
    %44 = arith.mulf %42, %43 : vector<24x256xf32>
    %45 = vector.extract_strided_slice %30 {offsets = [0, 3], sizes = [24, 1], strides = [1, 1]} : vector<24x9xf32> to vector<24x1xf32>
    %46 = vector.broadcast %45 : vector<24x1xf32> to vector<24x256xf32>
    %47 = arith.mulf %41, %46 : vector<24x256xf32>
    %48 = vector.extract_strided_slice %30 {offsets = [0, 4], sizes = [24, 1], strides = [1, 1]} : vector<24x9xf32> to vector<24x1xf32>
    %49 = vector.broadcast %48 : vector<24x1xf32> to vector<24x256xf32>
    %50 = arith.mulf %29, %49 : vector<24x256xf32>
    %51 = arith.addf %47, %50 : vector<24x256xf32>
    %52 = vector.extract_strided_slice %30 {offsets = [0, 5], sizes = [24, 1], strides = [1, 1]} : vector<24x9xf32> to vector<24x1xf32>
    %53 = vector.broadcast %52 : vector<24x1xf32> to vector<24x256xf32>
    %54 = arith.mulf %44, %53 : vector<24x256xf32>
    %55 = arith.addf %51, %54 : vector<24x256xf32>
    %56 = vector.extract_strided_slice %30 {offsets = [0, 0], sizes = [24, 1], strides = [1, 1]} : vector<24x9xf32> to vector<24x1xf32>
    %57 = vector.broadcast %56 : vector<24x1xf32> to vector<24x256xf32>
    %58 = arith.mulf %41, %57 : vector<24x256xf32>
    %59 = vector.extract_strided_slice %30 {offsets = [0, 1], sizes = [24, 1], strides = [1, 1]} : vector<24x9xf32> to vector<24x1xf32>
    %60 = vector.broadcast %59 : vector<24x1xf32> to vector<24x256xf32>
    %61 = arith.mulf %29, %60 : vector<24x256xf32>
    %62 = arith.addf %58, %61 : vector<24x256xf32>
    %63 = vector.extract_strided_slice %30 {offsets = [0, 2], sizes = [24, 1], strides = [1, 1]} : vector<24x9xf32> to vector<24x1xf32>
    %64 = vector.broadcast %63 : vector<24x1xf32> to vector<24x256xf32>
    %65 = arith.mulf %44, %64 : vector<24x256xf32>
    %66 = arith.addf %62, %65 : vector<24x256xf32>
    %c16_i32 = arith.constant 16 : i32
    %67 = tpu.dynamic_rotate %66 by %c16_i32 dim 1 : vector<24x256xf32>, i32 -> vector<24x256xf32>
    %68 = vector.broadcast %36 : vector<1x256xf32> to vector<24x256xf32>
    %69 = arith.mulf %67, %68 : vector<24x256xf32>
    %70 = arith.addf %55, %69 : vector<24x256xf32>
    %71 = vector.extract_strided_slice %30 {offsets = [0, 6], sizes = [24, 1], strides = [1, 1]} : vector<24x9xf32> to vector<24x1xf32>
    %72 = vector.broadcast %71 : vector<24x1xf32> to vector<24x256xf32>
    %73 = arith.mulf %41, %72 : vector<24x256xf32>
    %74 = vector.extract_strided_slice %30 {offsets = [0, 7], sizes = [24, 1], strides = [1, 1]} : vector<24x9xf32> to vector<24x1xf32>
    %75 = vector.broadcast %74 : vector<24x1xf32> to vector<24x256xf32>
    %76 = arith.mulf %29, %75 : vector<24x256xf32>
    %77 = arith.addf %73, %76 : vector<24x256xf32>
    %78 = vector.extract_strided_slice %30 {offsets = [0, 8], sizes = [24, 1], strides = [1, 1]} : vector<24x9xf32> to vector<24x1xf32>
    %79 = vector.broadcast %78 : vector<24x1xf32> to vector<24x256xf32>
    %80 = arith.mulf %44, %79 : vector<24x256xf32>
    %81 = arith.addf %77, %80 : vector<24x256xf32>
    %c240_i32 = arith.constant 240 : i32
    %82 = tpu.dynamic_rotate %81 by %c240_i32 dim 1 : vector<24x256xf32>, i32 -> vector<24x256xf32>
    %83 = vector.broadcast %38 : vector<1x256xf32> to vector<24x256xf32>
    %84 = arith.mulf %82, %83 : vector<24x256xf32>
    %85 = arith.addf %70, %84 : vector<24x256xf32>
    %c0_24 = arith.constant 0 : index
    %c0_25 = arith.constant 0 : index
    %86 = vector.load %arg7[%c0_24, %c0_25] : memref<24x1xf32, #tpu.memory_space<vmem>>, vector<24x1xf32>
    %87 = vector.broadcast %86 : vector<24x1xf32> to vector<24x256xf32>
    %88 = arith.addf %85, %87 : vector<24x256xf32>
    %cst_26 = arith.constant 0.000000e+00 : f32
    %89 = vector.broadcast %cst_26 : f32 to vector<24x256xf32>
    %90 = arith.maximumf %88, %89 : vector<24x256xf32>
    %91 = vector.extract_strided_slice %90 {offsets = [0, 16], sizes = [24, 128], strides = [1, 1]} : vector<24x256xf32> to vector<24x128xf32>
    %c0_27 = arith.constant 0 : index
    %c0_28 = arith.constant 0 : index
    %92 = vector.load %arg8[%c0_27, %c0_28] : memref<4x24xf32, #tpu.memory_space<vmem>>, vector<4x24xf32>
    %cst_29 = arith.constant dense<0.000000e+00> : vector<4x128xf32>
    %93 = tpu.matmul %92, %91, %cst_29 {dimension_numbers = #tpu.dot_dimension_numbers<[1], [0], [0], [1], [0, 0, 1, 1], [], []>} : vector<4x24xf32>, vector<24x128xf32>, vector<4x128xf32> -> vector<4x128xf32>
    %c0_30 = arith.constant 0 : index
    %c0_31 = arith.constant 0 : index
    %94 = vector.load %arg9[%c0_30, %c0_31] : memref<4x1xf32, #tpu.memory_space<vmem>>, vector<4x1xf32>
    %95 = vector.broadcast %94 : vector<4x1xf32> to vector<4x128xf32>
    %96 = arith.addf %93, %95 : vector<4x128xf32>
    %97 = vector.extract_strided_slice %1 {offsets = [0, 16], sizes = [4, 128], strides = [1, 1]} : vector<4x256xf32> to vector<4x128xf32>
    %98 = arith.addf %96, %97 : vector<4x128xf32>
    %c0_32 = arith.constant 0 : index
    %c0_33 = arith.constant 0 : index
    %c0_34 = arith.constant 0 : index
    %99 = vector.load %arg10[%c0_32, %c0_33, %c0_34] : memref<1x4x128xf32, #tpu.memory_space<vmem>>, vector<1x4x128xf32>
    %100 = vector.shape_cast %99 : vector<1x4x128xf32> to vector<4x128xf32>
    %101 = vector.shape_cast %98 : vector<4x128xf32> to vector<1x4x128xf32>
    tpu.vector_store %arg10[%c0_32, %c0_33, %c0_34], %101 {strides = array<i32>} : memref<1x4x128xf32, #tpu.memory_space<vmem>>, vector<1x4x128xf32>,
    return
  }
  func.func @transform_0(%arg0: i32, %arg1: i32) -> (i32, i32, i32, i32) {
    %c0_i32 = arith.constant 0 : i32
    %c0_i32_0 = arith.constant 0 : i32
    %c0_i32_1 = arith.constant 0 : i32
    return %arg0, %arg1, %c0_i32, %c0_i32_0 : i32, i32, i32, i32
  }
  func.func @transform_1(%arg0: i32, %arg1: i32) -> (i32, i32, i32) {
    %c0_i32 = arith.constant 0 : i32
    %c0_i32_0 = arith.constant 0 : i32
    %c0_i32_1 = arith.constant 0 : i32
    return %arg1, %c0_i32, %c0_i32_0 : i32, i32, i32
  }
  func.func @transform_2(%arg0: i32, %arg1: i32) -> (i32, i32) {
    %c0_i32 = arith.constant 0 : i32
    %c0_i32_0 = arith.constant 0 : i32
    %c0_i32_1 = arith.constant 0 : i32
    return %c0_i32, %c0_i32_0 : i32, i32
  }
  func.func @transform_3(%arg0: i32, %arg1: i32) -> (i32, i32) {
    %c0_i32 = arith.constant 0 : i32
    %c0_i32_0 = arith.constant 0 : i32
    %c0_i32_1 = arith.constant 0 : i32
    return %c0_i32, %c0_i32_0 : i32, i32
  }
  func.func @transform_4(%arg0: i32, %arg1: i32) -> (i32, i32) {
    %c0_i32 = arith.constant 0 : i32
    %c0_i32_0 = arith.constant 0 : i32
    %c0_i32_1 = arith.constant 0 : i32
    return %c0_i32, %c0_i32_0 : i32, i32
  }
  func.func @transform_5(%arg0: i32, %arg1: i32) -> (i32, i32) {
    %c0_i32 = arith.constant 0 : i32
    %c0_i32_0 = arith.constant 0 : i32
    %c0_i32_1 = arith.constant 0 : i32
    return %c0_i32, %c0_i32_0 : i32, i32
  }
  func.func @transform_6(%arg0: i32, %arg1: i32) -> (i32, i32) {
    %c0_i32 = arith.constant 0 : i32
    %c0_i32_0 = arith.constant 0 : i32
    %c0_i32_1 = arith.constant 0 : i32
    return %c0_i32, %c0_i32_0 : i32, i32
  }
  func.func @transform_7(%arg0: i32, %arg1: i32) -> (i32, i32) {
    %c0_i32 = arith.constant 0 : i32
    %c0_i32_0 = arith.constant 0 : i32
    %c0_i32_1 = arith.constant 0 : i32
    return %c0_i32, %c0_i32_0 : i32, i32
  }
  func.func @transform_8(%arg0: i32, %arg1: i32) -> (i32, i32, i32) {
    %c0_i32 = arith.constant 0 : i32
    %c0_i32_0 = arith.constant 0 : i32
    return %arg0, %c0_i32, %arg1 : i32, i32, i32
  }
}

module attributes {stable_mosaic.version = 11 : i64} {
  func.func @kernel(%arg0: i32, %arg1: i32, %arg2: memref<1x1x4x256xf32, #tpu.memory_space<vmem>>, %arg3: memref<1x4x256xf32, #tpu.memory_space<vmem>>, %arg4: memref<24x4xf32, #tpu.memory_space<vmem>>, %arg5: memref<24x1xf32, #tpu.memory_space<vmem>>, %arg6: memref<24x9xf32, #tpu.memory_space<vmem>>, %arg7: memref<24x1xf32, #tpu.memory_space<vmem>>, %arg8: memref<4x24xf32, #tpu.memory_space<vmem>>, %arg9: memref<4x1xf32, #tpu.memory_space<vmem>>, %arg10: memref<1x4x128xf32, #tpu.memory_space<vmem>>) attributes {dimension_semantics = [#tpu.dimension_semantics<parallel>, #tpu.dimension_semantics<parallel>], iteration_bounds = array<i64: 2, 2>, scalar_prefetch = 0 : i64, scratch_operands = 0 : i64, tpu.core_type = #tpu.core_type<tc>, window_params = [{transform_indices = @transform_0, window_bounds = array<i64: 1, 1, 4, 256>}, {transform_indices = @transform_1, window_bounds = array<i64: 1, 4, 256>}, {pipeline_mode = #tpu.pipeline_mode<synchronous>, transform_indices = @transform_2, window_bounds = array<i64: 24, 4>}, {pipeline_mode = #tpu.pipeline_mode<synchronous>, transform_indices = @transform_3, window_bounds = array<i64: 24, 1>}, {pipeline_mode = #tpu.pipeline_mode<synchronous>, transform_indices = @transform_4, window_bounds = array<i64: 24, 9>}, {pipeline_mode = #tpu.pipeline_mode<synchronous>, transform_indices = @transform_5, window_bounds = array<i64: 24, 1>}, {pipeline_mode = #tpu.pipeline_mode<synchronous>, transform_indices = @transform_6, window_bounds = array<i64: 4, 24>}, {pipeline_mode = #tpu.pipeline_mode<synchronous>, transform_indices = @transform_7, window_bounds = array<i64: 4, 1>}, {transform_indices = @transform_8, window_bounds = array<i64: 1, 4, 128>}]} {
    %c0 = arith.constant 0 : index
    %c0_0 = arith.constant 0 : index
    %c0_1 = arith.constant 0 : index
    %c0_2 = arith.constant 0 : index
    %0 = vector.load %arg2[%c0, %c0_0, %c0_1, %c0_2] : memref<1x1x4x256xf32, #tpu.memory_space<vmem>>, vector<1x1x4x256xf32>
    %1 = vector.shape_cast %0 : vector<1x1x4x256xf32> to vector<4x256xf32>
    %2 = vector.extract_strided_slice %1 {offsets = [0, 0], sizes = [1, 256], strides = [1, 1]} : vector<4x256xf32> to vector<1x256xf32>
    %c0_3 = arith.constant 0 : index
    %c0_4 = arith.constant 0 : index
    %3 = vector.load %arg4[%c0_3, %c0_4] : memref<24x4xf32, #tpu.memory_space<vmem>>, vector<24x1xf32>
    %4 = vector.broadcast %2 : vector<1x256xf32> to vector<24x256xf32>
    %5 = vector.broadcast %3 : vector<24x1xf32> to vector<24x256xf32>
    %6 = arith.mulf %4, %5 : vector<24x256xf32>
    %7 = vector.extract_strided_slice %1 {offsets = [1, 0], sizes = [1, 256], strides = [1, 1]} : vector<4x256xf32> to vector<1x256xf32>
    %c0_5 = arith.constant 0 : index
    %c1 = arith.constant 1 : index
    %8 = vector.load %arg4[%c0_5, %c1] : memref<24x4xf32, #tpu.memory_space<vmem>>, vector<24x1xf32>
    %9 = vector.broadcast %7 : vector<1x256xf32> to vector<24x256xf32>
    %10 = vector.broadcast %8 : vector<24x1xf32> to vector<24x256xf32>
    %11 = arith.mulf %9, %10 : vector<24x256xf32>
    %12 = arith.addf %6, %11 : vector<24x256xf32>
    %13 = vector.extract_strided_slice %1 {offsets = [2, 0], sizes = [1, 256], strides = [1, 1]} : vector<4x256xf32> to vector<1x256xf32>
    %c0_6 = arith.constant 0 : index
    %c2 = arith.constant 2 : index
    %14 = vector.load %arg4[%c0_6, %c2] : memref<24x4xf32, #tpu.memory_space<vmem>>, vector<24x1xf32>
    %15 = vector.broadcast %13 : vector<1x256xf32> to vector<24x256xf32>
    %16 = vector.broadcast %14 : vector<24x1xf32> to vector<24x256xf32>
    %17 = arith.mulf %15, %16 : vector<24x256xf32>
    %18 = arith.addf %12, %17 : vector<24x256xf32>
    %19 = vector.extract_strided_slice %1 {offsets = [3, 0], sizes = [1, 256], strides = [1, 1]} : vector<4x256xf32> to vector<1x256xf32>
    %c0_7 = arith.constant 0 : index
    %c3 = arith.constant 3 : index
    %20 = vector.load %arg4[%c0_7, %c3] : memref<24x4xf32, #tpu.memory_space<vmem>>, vector<24x1xf32>
    %21 = vector.broadcast %19 : vector<1x256xf32> to vector<24x256xf32>
    %22 = vector.broadcast %20 : vector<24x1xf32> to vector<24x256xf32>
    %23 = arith.mulf %21, %22 : vector<24x256xf32>
    %24 = arith.addf %18, %23 : vector<24x256xf32>
    %c0_8 = arith.constant 0 : index
    %c0_9 = arith.constant 0 : index
    %25 = vector.load %arg5[%c0_8, %c0_9] : memref<24x1xf32, #tpu.memory_space<vmem>>, vector<24x1xf32>
    %26 = vector.broadcast %25 : vector<24x1xf32> to vector<24x256xf32>
    %27 = arith.addf %24, %26 : vector<24x256xf32>
    %cst = arith.constant 0.000000e+00 : f32
    %28 = vector.broadcast %cst : f32 to vector<24x256xf32>
    %29 = arith.maximumf %27, %28 : vector<24x256xf32>
    %c0_10 = arith.constant 0 : index
    %c0_11 = arith.constant 0 : index
    %30 = vector.load %arg6[%c0_10, %c0_11] : memref<24x9xf32, #tpu.memory_space<vmem>>, vector<24x9xf32>
    %c0_12 = arith.constant 0 : index
    %c0_13 = arith.constant 0 : index
    %c0_14 = arith.constant 0 : index
    %31 = vector.load %arg3[%c0_12, %c0_13, %c0_14] : memref<1x4x256xf32, #tpu.memory_space<vmem>>, vector<1x1x256xf32>
    %32 = vector.shape_cast %31 : vector<1x1x256xf32> to vector<1x256xf32>
    %c0_15 = arith.constant 0 : index
    %c1_16 = arith.constant 1 : index
    %c0_17 = arith.constant 0 : index
    %33 = vector.load %arg3[%c0_15, %c1_16, %c0_17] : memref<1x4x256xf32, #tpu.memory_space<vmem>>, vector<1x1x256xf32>
    %34 = vector.shape_cast %33 : vector<1x1x256xf32> to vector<1x256xf32>
    %c0_18 = arith.constant 0 : index
    %c2_19 = arith.constant 2 : index
    %c0_20 = arith.constant 0 : index
    %35 = vector.load %arg3[%c0_18, %c2_19, %c0_20] : memref<1x4x256xf32, #tpu.memory_space<vmem>>, vector<1x1x256xf32>
    %36 = vector.shape_cast %35 : vector<1x1x256xf32> to vector<1x256xf32>
    %c0_21 = arith.constant 0 : index
    %c3_22 = arith.constant 3 : index
    %c0_23 = arith.constant 0 : index
    %37 = vector.load %arg3[%c0_21, %c3_22, %c0_23] : memref<1x4x256xf32, #tpu.memory_space<vmem>>, vector<1x1x256xf32>
    %38 = vector.shape_cast %37 : vector<1x1x256xf32> to vector<1x256xf32>
    %39 = vector.extract_strided_slice %29 {offsets = [0, 255], sizes = [24, 1], strides = [1, 1]} : vector<24x256xf32> to vector<24x1xf32>
    %40 = vector.extract_strided_slice %29 {offsets = [0, 0], sizes = [24, 255], strides = [1, 1]} : vector<24x256xf32> to vector<24x255xf32>
    %41 = tpu.concatenate %39, %40 in 1 : vector<24x1xf32>, vector<24x255xf32> -> vector<24x256xf32>
    %42 = vector.broadcast %32 : vector<1x256xf32> to vector<24x256xf32>
    %43 = arith.mulf %41, %42 : vector<24x256xf32>
    %44 = vector.extract_strided_slice %29 {offsets = [0, 1], sizes = [24, 255], strides = [1, 1]} : vector<24x256xf32> to vector<24x255xf32>
    %45 = vector.extract_strided_slice %29 {offsets = [0, 0], sizes = [24, 1], strides = [1, 1]} : vector<24x256xf32> to vector<24x1xf32>
    %46 = tpu.concatenate %44, %45 in 1 : vector<24x255xf32>, vector<24x1xf32> -> vector<24x256xf32>
    %47 = vector.broadcast %34 : vector<1x256xf32> to vector<24x256xf32>
    %48 = arith.mulf %46, %47 : vector<24x256xf32>
    %49 = vector.extract_strided_slice %30 {offsets = [0, 3], sizes = [24, 1], strides = [1, 1]} : vector<24x9xf32> to vector<24x1xf32>
    %50 = vector.broadcast %49 : vector<24x1xf32> to vector<24x256xf32>
    %51 = arith.mulf %43, %50 : vector<24x256xf32>
    %52 = vector.extract_strided_slice %30 {offsets = [0, 4], sizes = [24, 1], strides = [1, 1]} : vector<24x9xf32> to vector<24x1xf32>
    %53 = vector.broadcast %52 : vector<24x1xf32> to vector<24x256xf32>
    %54 = arith.mulf %29, %53 : vector<24x256xf32>
    %55 = arith.addf %51, %54 : vector<24x256xf32>
    %56 = vector.extract_strided_slice %30 {offsets = [0, 5], sizes = [24, 1], strides = [1, 1]} : vector<24x9xf32> to vector<24x1xf32>
    %57 = vector.broadcast %56 : vector<24x1xf32> to vector<24x256xf32>
    %58 = arith.mulf %48, %57 : vector<24x256xf32>
    %59 = arith.addf %55, %58 : vector<24x256xf32>
    %60 = vector.extract_strided_slice %30 {offsets = [0, 0], sizes = [24, 1], strides = [1, 1]} : vector<24x9xf32> to vector<24x1xf32>
    %61 = vector.broadcast %60 : vector<24x1xf32> to vector<24x256xf32>
    %62 = arith.mulf %43, %61 : vector<24x256xf32>
    %63 = vector.extract_strided_slice %30 {offsets = [0, 1], sizes = [24, 1], strides = [1, 1]} : vector<24x9xf32> to vector<24x1xf32>
    %64 = vector.broadcast %63 : vector<24x1xf32> to vector<24x256xf32>
    %65 = arith.mulf %29, %64 : vector<24x256xf32>
    %66 = arith.addf %62, %65 : vector<24x256xf32>
    %67 = vector.extract_strided_slice %30 {offsets = [0, 2], sizes = [24, 1], strides = [1, 1]} : vector<24x9xf32> to vector<24x1xf32>
    %68 = vector.broadcast %67 : vector<24x1xf32> to vector<24x256xf32>
    %69 = arith.mulf %48, %68 : vector<24x256xf32>
    %70 = arith.addf %66, %69 : vector<24x256xf32>
    %71 = vector.extract_strided_slice %70 {offsets = [0, 240], sizes = [24, 16], strides = [1, 1]} : vector<24x256xf32> to vector<24x16xf32>
    %72 = vector.extract_strided_slice %70 {offsets = [0, 0], sizes = [24, 240], strides = [1, 1]} : vector<24x256xf32> to vector<24x240xf32>
    %73 = tpu.concatenate %71, %72 in 1 : vector<24x16xf32>, vector<24x240xf32> -> vector<24x256xf32>
    %74 = vector.broadcast %36 : vector<1x256xf32> to vector<24x256xf32>
    %75 = arith.mulf %73, %74 : vector<24x256xf32>
    %76 = arith.addf %59, %75 : vector<24x256xf32>
    %77 = vector.extract_strided_slice %30 {offsets = [0, 6], sizes = [24, 1], strides = [1, 1]} : vector<24x9xf32> to vector<24x1xf32>
    %78 = vector.broadcast %77 : vector<24x1xf32> to vector<24x256xf32>
    %79 = arith.mulf %43, %78 : vector<24x256xf32>
    %80 = vector.extract_strided_slice %30 {offsets = [0, 7], sizes = [24, 1], strides = [1, 1]} : vector<24x9xf32> to vector<24x1xf32>
    %81 = vector.broadcast %80 : vector<24x1xf32> to vector<24x256xf32>
    %82 = arith.mulf %29, %81 : vector<24x256xf32>
    %83 = arith.addf %79, %82 : vector<24x256xf32>
    %84 = vector.extract_strided_slice %30 {offsets = [0, 8], sizes = [24, 1], strides = [1, 1]} : vector<24x9xf32> to vector<24x1xf32>
    %85 = vector.broadcast %84 : vector<24x1xf32> to vector<24x256xf32>
    %86 = arith.mulf %48, %85 : vector<24x256xf32>
    %87 = arith.addf %83, %86 : vector<24x256xf32>
    %88 = vector.extract_strided_slice %87 {offsets = [0, 16], sizes = [24, 240], strides = [1, 1]} : vector<24x256xf32> to vector<24x240xf32>
    %89 = vector.extract_strided_slice %87 {offsets = [0, 0], sizes = [24, 16], strides = [1, 1]} : vector<24x256xf32> to vector<24x16xf32>
    %90 = tpu.concatenate %88, %89 in 1 : vector<24x240xf32>, vector<24x16xf32> -> vector<24x256xf32>
    %91 = vector.broadcast %38 : vector<1x256xf32> to vector<24x256xf32>
    %92 = arith.mulf %90, %91 : vector<24x256xf32>
    %93 = arith.addf %76, %92 : vector<24x256xf32>
    %c0_24 = arith.constant 0 : index
    %c0_25 = arith.constant 0 : index
    %94 = vector.load %arg7[%c0_24, %c0_25] : memref<24x1xf32, #tpu.memory_space<vmem>>, vector<24x1xf32>
    %95 = vector.broadcast %94 : vector<24x1xf32> to vector<24x256xf32>
    %96 = arith.addf %93, %95 : vector<24x256xf32>
    %cst_26 = arith.constant 0.000000e+00 : f32
    %97 = vector.broadcast %cst_26 : f32 to vector<24x256xf32>
    %98 = arith.maximumf %96, %97 : vector<24x256xf32>
    %99 = vector.extract_strided_slice %98 {offsets = [0, 16], sizes = [24, 128], strides = [1, 1]} : vector<24x256xf32> to vector<24x128xf32>
    %c0_27 = arith.constant 0 : index
    %c0_28 = arith.constant 0 : index
    %100 = vector.load %arg8[%c0_27, %c0_28] : memref<4x24xf32, #tpu.memory_space<vmem>>, vector<4x24xf32>
    %cst_29 = arith.constant dense<0.000000e+00> : vector<4x128xf32>
    %101 = tpu.matmul %100, %99, %cst_29 {dimension_numbers = #tpu.dot_dimension_numbers<[1], [0], [0], [1], [0, 0, 1, 1], [], []>} : vector<4x24xf32>, vector<24x128xf32>, vector<4x128xf32> -> vector<4x128xf32>
    %c0_30 = arith.constant 0 : index
    %c0_31 = arith.constant 0 : index
    %102 = vector.load %arg9[%c0_30, %c0_31] : memref<4x1xf32, #tpu.memory_space<vmem>>, vector<4x1xf32>
    %103 = vector.broadcast %102 : vector<4x1xf32> to vector<4x128xf32>
    %104 = arith.addf %101, %103 : vector<4x128xf32>
    %105 = vector.extract_strided_slice %1 {offsets = [0, 16], sizes = [4, 128], strides = [1, 1]} : vector<4x256xf32> to vector<4x128xf32>
    %106 = arith.addf %104, %105 : vector<4x128xf32>
    %c0_32 = arith.constant 0 : index
    %c0_33 = arith.constant 0 : index
    %c0_34 = arith.constant 0 : index
    %107 = vector.load %arg10[%c0_32, %c0_33, %c0_34] : memref<1x4x128xf32, #tpu.memory_space<vmem>>, vector<1x4x128xf32>
    %108 = vector.shape_cast %107 : vector<1x4x128xf32> to vector<4x128xf32>
    %109 = vector.shape_cast %106 : vector<4x128xf32> to vector<1x4x128xf32>
    tpu.vector_store %arg10[%c0_32, %c0_33, %c0_34], %109 {strides = array<i32>} : memref<1x4x128xf32, #tpu.memory_space<vmem>>, vector<1x4x128xf32>,
    return
  }
  func.func @transform_0(%arg0: i32, %arg1: i32) -> (i32, i32, i32, i32) {
    %c0_i32 = arith.constant 0 : i32
    %c0_i32_0 = arith.constant 0 : i32
    %c0_i32_1 = arith.constant 0 : i32
    return %arg0, %arg1, %c0_i32, %c0_i32_0 : i32, i32, i32, i32
  }
  func.func @transform_1(%arg0: i32, %arg1: i32) -> (i32, i32, i32) {
    %c0_i32 = arith.constant 0 : i32
    %c0_i32_0 = arith.constant 0 : i32
    %c0_i32_1 = arith.constant 0 : i32
    return %arg1, %c0_i32, %c0_i32_0 : i32, i32, i32
  }
  func.func @transform_2(%arg0: i32, %arg1: i32) -> (i32, i32) {
    %c0_i32 = arith.constant 0 : i32
    %c0_i32_0 = arith.constant 0 : i32
    %c0_i32_1 = arith.constant 0 : i32
    return %c0_i32, %c0_i32_0 : i32, i32
  }
  func.func @transform_3(%arg0: i32, %arg1: i32) -> (i32, i32) {
    %c0_i32 = arith.constant 0 : i32
    %c0_i32_0 = arith.constant 0 : i32
    %c0_i32_1 = arith.constant 0 : i32
    return %c0_i32, %c0_i32_0 : i32, i32
  }
  func.func @transform_4(%arg0: i32, %arg1: i32) -> (i32, i32) {
    %c0_i32 = arith.constant 0 : i32
    %c0_i32_0 = arith.constant 0 : i32
    %c0_i32_1 = arith.constant 0 : i32
    return %c0_i32, %c0_i32_0 : i32, i32
  }
  func.func @transform_5(%arg0: i32, %arg1: i32) -> (i32, i32) {
    %c0_i32 = arith.constant 0 : i32
    %c0_i32_0 = arith.constant 0 : i32
    %c0_i32_1 = arith.constant 0 : i32
    return %c0_i32, %c0_i32_0 : i32, i32
  }
  func.func @transform_6(%arg0: i32, %arg1: i32) -> (i32, i32) {
    %c0_i32 = arith.constant 0 : i32
    %c0_i32_0 = arith.constant 0 : i32
    %c0_i32_1 = arith.constant 0 : i32
    return %c0_i32, %c0_i32_0 : i32, i32
  }
  func.func @transform_7(%arg0: i32, %arg1: i32) -> (i32, i32) {
    %c0_i32 = arith.constant 0 : i32
    %c0_i32_0 = arith.constant 0 : i32
    %c0_i32_1 = arith.constant 0 : i32
    return %c0_i32, %c0_i32_0 : i32, i32
  }
  func.func @transform_8(%arg0: i32, %arg1: i32) -> (i32, i32, i32) {
    %c0_i32 = arith.constant 0 : i32
    %c0_i32_0 = arith.constant 0 : i32
    return %arg0, %c0_i32, %arg1 : i32, i32, i32
  }
}

</mosaic_0001>

<llo_original>
// kernel: tpu_custom_call.1
$region0: #{tpu_custom_call.1}
  #allocation0 [shape = 'u32[]', space=smem, size = 0x4, offset = 0x4, fixed_abs, tag = 'smem constant byte address 0x4 - core index']
  #allocation1 [shape = 'u32[144,128]{1,0:T(1,128)}', space=vmem, size = 0x12000, scoped, tag = 'internal scratch']
  %s0 = inlined_call_operand.vmem [shape: f32[2,2,4,256], index: 0, kind: input, shape index: {}]
  %s1 = inlined_call_operand.vmem [shape: f32[2,4,256], index: 1, kind: input, shape index: {}]
  %s2 = inlined_call_operand.vmem [shape: f32[24,4], index: 2, kind: input, shape index: {}]
  %s3 = inlined_call_operand.vmem [shape: f32[24,1], index: 3, kind: input, shape index: {}]
  %s4 = inlined_call_operand.vmem [shape: f32[24,9], index: 4, kind: input, shape index: {}]
  %s5 = inlined_call_operand.vmem [shape: f32[24,1], index: 5, kind: input, shape index: {}]
  %s6 = inlined_call_operand.vmem [shape: f32[4,24], index: 6, kind: input, shape index: {}]
  %s7 = inlined_call_operand.vmem [shape: f32[4,1], index: 7, kind: input, shape index: {}]
  %s8 = inlined_call_operand.hbm [shape: f32[2,4,256], index: 8, kind: output, shape index: {}]
  %s9 = sld [smem:[#allocation0]]
  $region65: #{tpu_custom_call.1} parent=0
    _
  %s11 = ssub.s32 1, %s9
  %s12 = scalar_select 0, %s11, %s9
  $region1: #{tpu_custom_call.1} parent=0
    #allocation2 [shape = 'u8[4096]{0}', space=vmem, size = 0x1000, scoped, tag = 'output window, operand 0']
    #allocation3 [shape = 's32[2]{0}', space=sflag, size = 0x8, scoped, tag = 'scoped memory for tpu_custom_call.1']
    %13 = vsyncpa [#allocation3], 0
    %s14 = scalar_lea.sflag [#allocation3], 1
    %15 = vsyncpa %s14, 0
    loop: start=0, step=1, limit=6
    $region2: #{tpu_custom_call.1} parent=1 // loop_pre_header
      _
    $region3: #{tpu_custom_call.1} parent=1 // loop_header
      %s17 = sphi 0, %s21
      %p18 = scmp.ge.s32.totalorder %s17, 6
      %s24 = sphi 0, %s36
      %s25 = sphi 0, %s32
      %s26 = sphi 0, %s24
      %s27 = sphi 0, %s25
      %s28 = sphi 0, %s26
      %s29 = sphi 0, %s27
      %s41 = sphi 0, %s43
      %s44 = sphi 0, %s41
      %s45 = sphi 0, %s44
      %s61 = sphi 0, %s45
      %s67 = sphi 0, %s69
      %s70 = sphi 0, %s67
      %s71 = sphi 0, %s70
      %s87 = sphi 0, %s71
      %s91 = sphi 0, %s91
      %s93 = sphi 0, %s91
      %s94 = sphi 0, %s93
      %s108 = sphi 0, %s94
      %s112 = sphi 0, %s112
      %s114 = sphi 0, %s112
      %s115 = sphi 0, %s114
      %s129 = sphi 0, %s115
      %s133 = sphi 0, %s133
      %s135 = sphi 0, %s133
      %s136 = sphi 0, %s135
      %s150 = sphi 0, %s136
      %s154 = sphi 0, %s154
      %s156 = sphi 0, %s154
      %s157 = sphi 0, %s156
      %s171 = sphi 0, %s157
      %s175 = sphi 0, %s175
      %s177 = sphi 0, %s175
      %s178 = sphi 0, %s177
      %s192 = sphi 0, %s178
      %s196 = sphi 0, %s196
      %s198 = sphi 0, %s196
      %s199 = sphi 0, %s198
      %s213 = sphi 0, %s199
      %s221 = sphi 0, %s223
      %s224 = sphi 0, %s221
      %s225 = sphi 0, %s224
      %s241 = sphi 0, %s225
    $region4: #{tpu_custom_call.1} parent=1 // loop_header_branch
      %20 = sbr.rel (%p18) target = $region8
    $region5: #{tpu_custom_call.1} parent=1 // loop_body
      %s22 = ssub.s32 %s17, 1
      %s23 = ssub.s32 %s17, 2
      %s30 = sadd.s32 1, %s25
      %p31 = scmp.ge.s32.totalorder %s30, 2
      %s32 = scalar_select %p31, 0, %s30
      %s33 = sadd.s32 1, %s24
      %s34 = scalar_select %p31, %s33, %s24
      %p35 = scmp.ge.s32.totalorder %s34, 2
      %s36 = scalar_select %p35, 0, %s34
      %s37 = ssub.s32 %s24, %s36
      %s38 = ssub.s32 %s25, %s32
      %s39 = sor.u32 %s37, %s38
      %p40 = scmp.eq.s32.totalorder %s39, 0
      %s42 = sadd.s32 %s41, 1
      %s43 = scalar_select %p40, %s41, %s42
      %p46 = pneg %p40
      %p47 = scmp.eq.s32.totalorder %s17, 3
      %p48 = por %p46, %p47
      %p49 = scmp.ne.s32.totalorder %s41, %s44
      %p50 = scmp.eq.s32.totalorder %s17, 0
      %p51 = por %p49, %p50
      %p52 = scmp.ne.s32.totalorder %s41, %s44
      %p53 = scmp.eq.s32.totalorder %s22, 3
      %p54 = por %p52, %p53
      %p55 = scmp.ne.s32.totalorder %s44, %s45
      %p56 = scmp.eq.s32.totalorder %s22, 0
      %p57 = por %p55, %p56
      %p58 = scmp.ne.s32.totalorder %s44, %s45
      %p59 = scmp.eq.s32.totalorder %s23, 3
      %p60 = por %p58, %p59
      %p62 = scmp.ne.s32.totalorder %s45, %s61
      %p63 = scmp.eq.s32.totalorder %s23, 0
      %p64 = por %p62, %p63
      %s65 = ssub.s32 %s25, %s32
      %p66 = scmp.eq.s32.totalorder %s65, 0
      %s68 = sadd.s32 %s67, 1
      %s69 = scalar_select %p66, %s67, %s68
      %p72 = pneg %p66
      %p73 = scmp.eq.s32.totalorder %s17, 3
      %p74 = por %p72, %p73
      %p75 = scmp.ne.s32.totalorder %s67, %s70
      %p76 = scmp.eq.s32.totalorder %s17, 0
      %p77 = por %p75, %p76
      %p78 = scmp.ne.s32.totalorder %s67, %s70
      %p79 = scmp.eq.s32.totalorder %s22, 3
      %p80 = por %p78, %p79
      %p81 = scmp.ne.s32.totalorder %s70, %s71
      %p82 = scmp.eq.s32.totalorder %s22, 0
      %p83 = por %p81, %p82
      %p84 = scmp.ne.s32.totalorder %s70, %s71
      %p85 = scmp.eq.s32.totalorder %s23, 3
      %p86 = por %p84, %p85
      %p88 = scmp.ne.s32.totalorder %s71, %s87
      %p89 = scmp.eq.s32.totalorder %s23, 0
      %p90 = por %p88, %p89
      %s92 = sadd.s32 %s91, 1
      %p95 = scmp.eq.s32.totalorder %s17, 3
      %p96 = scmp.ne.s32.totalorder %s91, %s93
      %p97 = scmp.eq.s32.totalorder %s17, 0
      %p98 = por %p96, %p97
      %p99 = scmp.ne.s32.totalorder %s91, %s93
      %p100 = scmp.eq.s32.totalorder %s22, 3
      %p101 = por %p99, %p100
      %p102 = scmp.ne.s32.totalorder %s93, %s94
      %p103 = scmp.eq.s32.totalorder %s22, 0
      %p104 = por %p102, %p103
      %p105 = scmp.ne.s32.totalorder %s93, %s94
      %p106 = scmp.eq.s32.totalorder %s23, 3
      %p107 = por %p105, %p106
      %p109 = scmp.ne.s32.totalorder %s94, %s108
      %p110 = scmp.eq.s32.totalorder %s23, 0
      %p111 = por %p109, %p110
      %s113 = sadd.s32 %s112, 1
      %p116 = scmp.eq.s32.totalorder %s17, 3
      %p117 = scmp.ne.s32.totalorder %s112, %s114
      %p118 = scmp.eq.s32.totalorder %s17, 0
      %p119 = por %p117, %p118
      %p120 = scmp.ne.s32.totalorder %s112, %s114
      %p121 = scmp.eq.s32.totalorder %s22, 3
      %p122 = por %p120, %p121
      %p123 = scmp.ne.s32.totalorder %s114, %s115
      %p124 = scmp.eq.s32.totalorder %s22, 0
      %p125 = por %p123, %p124
      %p126 = scmp.ne.s32.totalorder %s114, %s115
      %p127 = scmp.eq.s32.totalorder %s23, 3
      %p128 = por %p126, %p127
      %p130 = scmp.ne.s32.totalorder %s115, %s129
      %p131 = scmp.eq.s32.totalorder %s23, 0
      %p132 = por %p130, %p131
      %s134 = sadd.s32 %s133, 1
      %p137 = scmp.eq.s32.totalorder %s17, 3
      %p138 = scmp.ne.s32.totalorder %s133, %s135
      %p139 = scmp.eq.s32.totalorder %s17, 0
      %p140 = por %p138, %p139
      %p141 = scmp.ne.s32.totalorder %s133, %s135
      %p142 = scmp.eq.s32.totalorder %s22, 3
      %p143 = por %p141, %p142
      %p144 = scmp.ne.s32.totalorder %s135, %s136
      %p145 = scmp.eq.s32.totalorder %s22, 0
      %p146 = por %p144, %p145
      %p147 = scmp.ne.s32.totalorder %s135, %s136
      %p148 = scmp.eq.s32.totalorder %s23, 3
      %p149 = por %p147, %p148
      %p151 = scmp.ne.s32.totalorder %s136, %s150
      %p152 = scmp.eq.s32.totalorder %s23, 0
      %p153 = por %p151, %p152
      %s155 = sadd.s32 %s154, 1
      %p158 = scmp.eq.s32.totalorder %s17, 3
      %p159 = scmp.ne.s32.totalorder %s154, %s156
      %p160 = scmp.eq.s32.totalorder %s17, 0
      %p161 = por %p159, %p160
      %p162 = scmp.ne.s32.totalorder %s154, %s156
      %p163 = scmp.eq.s32.totalorder %s22, 3
      %p164 = por %p162, %p163
      %p165 = scmp.ne.s32.totalorder %s156, %s157
      %p166 = scmp.eq.s32.totalorder %s22, 0
      %p167 = por %p165, %p166
      %p168 = scmp.ne.s32.totalorder %s156, %s157
      %p169 = scmp.eq.s32.totalorder %s23, 3
      %p170 = por %p168, %p169
      %p172 = scmp.ne.s32.totalorder %s157, %s171
      %p173 = scmp.eq.s32.totalorder %s23, 0
      %p174 = por %p172, %p173
      %s176 = sadd.s32 %s175, 1
      %p179 = scmp.eq.s32.totalorder %s17, 3
      %p180 = scmp.ne.s32.totalorder %s175, %s177
      %p181 = scmp.eq.s32.totalorder %s17, 0
      %p182 = por %p180, %p181
      %p183 = scmp.ne.s32.totalorder %s175, %s177
      %p184 = scmp.eq.s32.totalorder %s22, 3
      %p185 = por %p183, %p184
      %p186 = scmp.ne.s32.totalorder %s177, %s178
      %p187 = scmp.eq.s32.totalorder %s22, 0
      %p188 = por %p186, %p187
      %p189 = scmp.ne.s32.totalorder %s177, %s178
      %p190 = scmp.eq.s32.totalorder %s23, 3
      %p191 = por %p189, %p190
      %p193 = scmp.ne.s32.totalorder %s178, %s192
      %p194 = scmp.eq.s32.totalorder %s23, 0
      %p195 = por %p193, %p194
      %s197 = sadd.s32 %s196, 1
      %p200 = scmp.eq.s32.totalorder %s17, 3
      %p201 = scmp.ne.s32.totalorder %s196, %s198
      %p202 = scmp.eq.s32.totalorder %s17, 0
      %p203 = por %p201, %p202
      %p204 = scmp.ne.s32.totalorder %s196, %s198
      %p205 = scmp.eq.s32.totalorder %s22, 3
      %p206 = por %p204, %p205
      %p207 = scmp.ne.s32.totalorder %s198, %s199
      %p208 = scmp.eq.s32.totalorder %s22, 0
      %p209 = por %p207, %p208
      %p210 = scmp.ne.s32.totalorder %s198, %s199
      %p211 = scmp.eq.s32.totalorder %s23, 3
      %p212 = por %p210, %p211
      %p214 = scmp.ne.s32.totalorder %s199, %s213
      %p215 = scmp.eq.s32.totalorder %s23, 0
      %p216 = por %p214, %p215
      %s217 = ssub.s32 %s24, %s36
      %s218 = ssub.s32 %s25, %s32
      %s219 = sor.u32 %s217, %s218
      %p220 = scmp.eq.s32.totalorder %s219, 0
      %s222 = sadd.s32 %s221, 1
      %s223 = scalar_select %p220, %s221, %s222
      %p226 = pneg %p220
      %p227 = scmp.eq.s32.totalorder %s17, 3
      %p228 = por %p226, %p227
      %p229 = scmp.ne.s32.totalorder %s221, %s224
      %p230 = scmp.eq.s32.totalorder %s17, 0
      %p231 = por %p229, %p230
      %p232 = scmp.ne.s32.totalorder %s221, %s224
      %p233 = scmp.eq.s32.totalorder %s22, 3
      %p234 = por %p232, %p233
      %p235 = scmp.ne.s32.totalorder %s224, %s225
      %p236 = scmp.eq.s32.totalorder %s22, 0
      %p237 = por %p235, %p236
      %p238 = scmp.ne.s32.totalorder %s224, %s225
      %p239 = scmp.eq.s32.totalorder %s23, 3
      %p240 = por %p238, %p239
      %p242 = scmp.ne.s32.totalorder %s225, %s241
      %p243 = scmp.eq.s32.totalorder %s23, 0
      %p244 = por %p242, %p243
      %p245 = scmp.le.s32.totalorder 1, %s17
      %p246 = scmp.lt.s32.totalorder %s17, 5
      %p247 = pnand %p245, %p246
      %p248 = pneg %p247
      // Predicated region
      $region9: #{tpu_custom_call.1} parent=5 // pred_check
        _
      $region10: #{tpu_custom_call.1} parent=5 // pred_check_branch
        %250 = sbr.rel (%p247) target = $region12
      $region11: #{tpu_custom_call.1} parent=5 // pred_region
        %s251 = ssub.s32 %s17, 1
        // Predicated region
        $region13: #{tpu_custom_call.1} parent=11 // pred_check
          %p252 = pneg %p104
        $region14: #{tpu_custom_call.1} parent=11 // pred_check_branch
          %254 = sbr.rel (%p252) target = $region16
        $region15: #{tpu_custom_call.1} parent=11 // pred_region
          _
        $region16: #{tpu_custom_call.1} parent=11 // pred_fallthru
          _
        // Predicated region
        $region17: #{tpu_custom_call.1} parent=11 // pred_check
          %p255 = pneg %p125
        $region18: #{tpu_custom_call.1} parent=11 // pred_check_branch
          %257 = sbr.rel (%p255) target = $region20
        $region19: #{tpu_custom_call.1} parent=11 // pred_region
          _
        $region20: #{tpu_custom_call.1} parent=11 // pred_fallthru
          _
        // Predicated region
        $region21: #{tpu_custom_call.1} parent=11 // pred_check
          %p258 = pneg %p146
        $region22: #{tpu_custom_call.1} parent=11 // pred_check_branch
          %260 = sbr.rel (%p258) target = $region24
        $region23: #{tpu_custom_call.1} parent=11 // pred_region
          _
        $region24: #{tpu_custom_call.1} parent=11 // pred_fallthru
          _
        // Predicated region
        $region25: #{tpu_custom_call.1} parent=11 // pred_check
          %p261 = pneg %p167
        $region26: #{tpu_custom_call.1} parent=11 // pred_check_branch
          %263 = sbr.rel (%p261) target = $region28
        $region27: #{tpu_custom_call.1} parent=11 // pred_region
          _
        $region28: #{tpu_custom_call.1} parent=11 // pred_fallthru
          _
        // Predicated region
        $region29: #{tpu_custom_call.1} parent=11 // pred_check
          %p264 = pneg %p188
        $region30: #{tpu_custom_call.1} parent=11 // pred_check_branch
          %266 = sbr.rel (%p264) target = $region32
        $region31: #{tpu_custom_call.1} parent=11 // pred_region
          _
        $region32: #{tpu_custom_call.1} parent=11 // pred_fallthru
          _
        // Predicated region
        $region33: #{tpu_custom_call.1} parent=11 // pred_check
          %p267 = pneg %p209
        $region34: #{tpu_custom_call.1} parent=11 // pred_check_branch
          %269 = sbr.rel (%p267) target = $region36
        $region35: #{tpu_custom_call.1} parent=11 // pred_region
          _
        $region36: #{tpu_custom_call.1} parent=11 // pred_fallthru
          _
      $region12: #{tpu_custom_call.1} parent=5 // pred_fallthru
        _
      %p270 = scmp.lt.s32.totalorder %s17, 4
      // Predicated region
      $region37: #{tpu_custom_call.1} parent=5 // pred_check
        %p271 = pneg %p270
      $region38: #{tpu_custom_call.1} parent=5 // pred_check_branch
        %273 = sbr.rel (%p271) target = $region40
      $region39: #{tpu_custom_call.1} parent=5 // pred_region
        // Predicated region
        $region41: #{tpu_custom_call.1} parent=39 // pred_check
          %p274 = pneg %p51
        $region42: #{tpu_custom_call.1} parent=39 // pred_check_branch
          %276 = sbr.rel (%p274) target = $region44
        $region43: #{tpu_custom_call.1} parent=39 // pred_region
          %p277 = scmp.lt.s32.totalorder %s24, 1
          %s278 = scalar_select %p277, %s24, 1
          %p279 = scmp.lt.s32.totalorder %s25, 1
          %s280 = scalar_select %p279, %s25, 1
          %s281 = smul.addr %s280, 2
          %s282 = smul.addr %s278, 4
          %s283 = sadd.s32 %s281, %s282
          %s284 = smul.addr %s283, 4
          %s285 = scalar_lea.vmem %s0, %s284
        $region44: #{tpu_custom_call.1} parent=39 // pred_fallthru
          _
        // Predicated region
        $region45: #{tpu_custom_call.1} parent=39 // pred_check
          %p286 = pneg %p77
        $region46: #{tpu_custom_call.1} parent=39 // pred_check_branch
          %288 = sbr.rel (%p286) target = $region48
        $region47: #{tpu_custom_call.1} parent=39 // pred_region
          %p289 = scmp.lt.s32.totalorder %s25, 1
          %s290 = scalar_select %p289, %s25, 1
          %s291 = smul.addr %s290, 2
          %s292 = smul.addr %s291, 4
          %s293 = scalar_lea.vmem %s1, %s292
        $region48: #{tpu_custom_call.1} parent=39 // pred_fallthru
          _
      $region40: #{tpu_custom_call.1} parent=5 // pred_fallthru
        _
      %p294 = scmp.le.s32.totalorder 1, %s17
      %p295 = scmp.lt.s32.totalorder %s17, 5
      %p296 = pnand %p294, %p295
      %p297 = pneg %p296
      // Predicated region
      $region49: #{tpu_custom_call.1} parent=5 // pred_check
        _
      $region50: #{tpu_custom_call.1} parent=5 // pred_check_branch
        %299 = sbr.rel (%p296) target = $region52
      $region51: #{tpu_custom_call.1} parent=5 // pred_region
        %s300 = ssub.s32 %s17, 1
        %p301 = scmp.lt.s32.totalorder %s26, 1
        %s302 = scalar_select %p301, %s26, 1
        %p303 = scmp.lt.s32.totalorder %s27, 1
        %s304 = scalar_select %p303, %s27, 1
        %s305 = smul.addr %s304, 2
        %s306 = smul.addr %s302, 4
        %s307 = sadd.s32 %s305, %s306
        %s308 = smul.addr %s307, 4
        %s309 = scalar_lea.vmem %s0, %s308
        %p310 = pneg %p57
        %p311 = pneg %p54
        %p312 = scmp.lt.s32.totalorder %s27, 1
        %s313 = scalar_select %p312, %s27, 1
        %s314 = smul.addr %s313, 2
        %s315 = smul.addr %s314, 4
        %s316 = scalar_lea.vmem %s1, %s315
        %p317 = pneg %p83
        %p318 = pneg %p80
        %p319 = pneg %p104
        %p320 = pneg %p101
        %p321 = pneg %p125
        %p322 = pneg %p122
        %p323 = pneg %p146
        %p324 = pneg %p143
        %p325 = pneg %p167
        %p326 = pneg %p164
        %p327 = pneg %p188
        %p328 = pneg %p185
        %p329 = pneg %p209
        %p330 = pneg %p206
        %p331 = pneg %p237
        %p332 = pneg %p234
        %s333 = sand.u32 %s224, 1
        %s334 = scalar_lea.sflag [#allocation3], %s333
        %s335 = sand.u32 %s224, 1
        %s336 = smul.addr %s335, 4
        %s337 = scalar_lea.vmem [#allocation2], %s336
        %p338 = scmp.lt.s32.totalorder %s26, 1
        %s339 = scalar_select %p338, %s26, 1
        %p340 = scmp.lt.s32.totalorder %s27, 1
        %s341 = scalar_select %p340, %s27, 1
        %s342 = smul.addr %s341, 2
        %s343 = smul.addr %s339, 4
        %s344 = sadd.s32 %s342, %s343
        %s345 = smul.addr %s344, 4
        %s346 = scalar_lea.vmem %s0, %s345
        %p347 = scmp.lt.s32.totalorder %s27, 1
        %s348 = scalar_select %p347, %s27, 1
        %s349 = smul.addr %s348, 2
        %s350 = smul.addr %s349, 4
        %s351 = scalar_lea.vmem %s1, %s350
        %v352 = vld [vmem:[%s346] sm:$0xff]
        %v353 = vld [vmem:[%s2] sm:$0xff]
        %v354 = vld [vmem:[%s2 + $0x8] sm:$0xff]
        %v355 = vld [vmem:[%s2 + $0x10] sm:$0xff]
        %v357 = vlaneseq
        %v358 = vshrl.u32 %v357, 7
        %v359 = vsub.s32 0, %v358
        %v360 = vrot.slane %v352, %v359
        %v361 = vlaneseq
        %v362 = vshrl.u32 %v361, 7
        %v363 = vsub.s32 4, %v362
        %v364 = vrot.slane %v352, %v363
        %v367 = vlaneseq
        %v368 = vshrl.u32 %v367, 7
        %v369 = vsub.s32 0, %v368
        %v370 = vrot.slane %v360, %v369
        %v371 = vlaneseq
        %v372 = vshrl.u32 %v371, 7
        %v373 = vsub.s32 0, %v372
        %v374 = vrot.slane %v364, %v373
        %376 = vset.pattern.permute.xlu0 0
        %377 = vperm.xlu0 %376, %v353
        %v378 = vpop.permute.xlu0 %377
        %381 = vset.pattern.permute.xlu0 0
        %382 = vperm.xlu0 %381, %v354
        %v383 = vpop.permute.xlu0 %382
        %386 = vset.pattern.permute.xlu0 0
        %387 = vperm.xlu0 %386, %v355
        %v388 = vpop.permute.xlu0 %387
        %v390 = vmul.f32 %v370, %v378
        %v391 = vmul.f32 %v374, %v378
        %v392 = vmul.f32 %v370, %v383
        %v393 = vmul.f32 %v374, %v383
        %v394 = vmul.f32 %v370, %v388
        %v395 = vmul.f32 %v374, %v388
        %v396 = vlaneseq
        %v397 = vshrl.u32 %v396, 7
        %v398 = vsub.s32 1, %v397
        %v399 = vrot.slane %v352, %v398
        %v400 = vlaneseq
        %v401 = vshrl.u32 %v400, 7
        %v402 = vsub.s32 5, %v401
        %v403 = vrot.slane %v352, %v402
        %v406 = vlaneseq
        %v407 = vshrl.u32 %v406, 7
        %v408 = vsub.s32 1, %v407
        %v409 = vrot.slane %v399, %v408
        %v410 = vlaneseq
        %v411 = vshrl.u32 %v410, 7
        %v412 = vsub.s32 1, %v411
        %v413 = vrot.slane %v403, %v412
        %414 = vset.pattern.permute.xlu0 1
        %415 = vperm.xlu0 %414, %v353
        %v416 = vpop.permute.xlu0 %415
        %418 = vset.pattern.permute.xlu0 1
        %419 = vperm.xlu0 %418, %v354
        %v420 = vpop.permute.xlu0 %419
        %422 = vset.pattern.permute.xlu0 1
        %423 = vperm.xlu0 %422, %v355
        %v424 = vpop.permute.xlu0 %423
        %v426 = vmul.f32 %v409, %v416
        %v427 = vmul.f32 %v413, %v416
        %v428 = vmul.f32 %v409, %v420
        %v429 = vmul.f32 %v413, %v420
        %v430 = vmul.f32 %v409, %v424
        %v431 = vmul.f32 %v413, %v424
        %v432 = vadd.f32 %v390, %v426
        %v433 = vadd.f32 %v391, %v427
        %v434 = vadd.f32 %v392, %v428
        %v435 = vadd.f32 %v393, %v429
        %v436 = vadd.f32 %v394, %v430
        %v437 = vadd.f32 %v395, %v431
        %v438 = vlaneseq
        %v439 = vshrl.u32 %v438, 7
        %v440 = vsub.s32 2, %v439
        %v441 = vrot.slane %v352, %v440
        %v442 = vlaneseq
        %v443 = vshrl.u32 %v442, 7
        %v444 = vsub.s32 6, %v443
        %v445 = vrot.slane %v352, %v444
        %v448 = vlaneseq
        %v449 = vshrl.u32 %v448, 7
        %v450 = vsub.s32 2, %v449
        %v451 = vrot.slane %v441, %v450
        %v452 = vlaneseq
        %v453 = vshrl.u32 %v452, 7
        %v454 = vsub.s32 2, %v453
        %v455 = vrot.slane %v445, %v454
        %456 = vset.pattern.permute.xlu0 2
        %457 = vperm.xlu0 %456, %v353
        %v458 = vpop.permute.xlu0 %457
        %460 = vset.pattern.permute.xlu0 2
        %461 = vperm.xlu0 %460, %v354
        %v462 = vpop.permute.xlu0 %461
        %464 = vset.pattern.permute.xlu0 2
        %465 = vperm.xlu0 %464, %v355
        %v466 = vpop.permute.xlu0 %465
        %v468 = vmul.f32 %v451, %v458
        %v469 = vmul.f32 %v455, %v458
        %v470 = vmul.f32 %v451, %v462
        %v471 = vmul.f32 %v455, %v462
        %v472 = vmul.f32 %v451, %v466
        %v473 = vmul.f32 %v455, %v466
        %v474 = vadd.f32 %v432, %v468
        %v475 = vadd.f32 %v433, %v469
        %v476 = vadd.f32 %v434, %v470
        %v477 = vadd.f32 %v435, %v471
        %v478 = vadd.f32 %v436, %v472
        %v479 = vadd.f32 %v437, %v473
        %v480 = vlaneseq
        %v481 = vshrl.u32 %v480, 7
        %v482 = vsub.s32 3, %v481
        %v483 = vrot.slane %v352, %v482
        %v484 = vlaneseq
        %v485 = vshrl.u32 %v484, 7
        %v486 = vsub.s32 7, %v485
        %v487 = vrot.slane %v352, %v486
        %v490 = vlaneseq
        %v491 = vshrl.u32 %v490, 7
        %v492 = vsub.s32 3, %v491
        %v493 = vrot.slane %v483, %v492
        %v494 = vlaneseq
        %v495 = vshrl.u32 %v494, 7
        %v496 = vsub.s32 3, %v495
        %v497 = vrot.slane %v487, %v496
        %498 = vset.pattern.permute.xlu0 3
        %499 = vperm.xlu0 %498, %v353
        %v500 = vpop.permute.xlu0 %499
        %502 = vset.pattern.permute.xlu0 3
        %503 = vperm.xlu0 %502, %v354
        %v504 = vpop.permute.xlu0 %503
        %506 = vset.pattern.permute.xlu0 3
        %507 = vperm.xlu0 %506, %v355
        %v508 = vpop.permute.xlu0 %507
        %v510 = vmul.f32 %v493, %v500
        %v511 = vmul.f32 %v497, %v500
        %v512 = vmul.f32 %v493, %v504
        %v513 = vmul.f32 %v497, %v504
        %v514 = vmul.f32 %v493, %v508
        %v515 = vmul.f32 %v497, %v508
        %v516 = vadd.f32 %v474, %v510
        %v517 = vadd.f32 %v475, %v511
        %v518 = vadd.f32 %v476, %v512
        %v519 = vadd.f32 %v477, %v513
        %v520 = vadd.f32 %v478, %v514
        %v521 = vadd.f32 %v479, %v515
        %v522 = vld [vmem:[%s3] sm:$0xff]
        %v523 = vld [vmem:[%s3 + $0x8] sm:$0xff]
        %v524 = vld [vmem:[%s3 + $0x10] sm:$0xff]
        %526 = vset.pattern.permute.xlu0 0
        %527 = vperm.xlu0 %526, %v522
        %v528 = vpop.permute.xlu0 %527
        %531 = vset.pattern.permute.xlu0 0
        %532 = vperm.xlu0 %531, %v523
        %v533 = vpop.permute.xlu0 %532
        %536 = vset.pattern.permute.xlu0 0
        %537 = vperm.xlu0 %536, %v524
        %v538 = vpop.permute.xlu0 %537
        %v540 = vadd.f32 %v516, %v528
        %v541 = vadd.f32 %v517, %v528
        %v542 = vadd.f32 %v518, %v533
        %v543 = vadd.f32 %v519, %v533
        %v544 = vadd.f32 %v520, %v538
        %v545 = vadd.f32 %v521, %v538
        %v546 = vmax.f32 %v540, 0.0
        %v547 = vmax.f32 %v541, 0.0
        %v548 = vmax.f32 %v542, 0.0
        %v549 = vmax.f32 %v543, 0.0
        %v550 = vmax.f32 %v544, 0.0
        %v551 = vmax.f32 %v545, 0.0
        %v552 = vld [vmem:[%s4] sm:$0xff]
        %v553 = vld [vmem:[%s4 + $0x8] sm:$0xff]
        %v554 = vld [vmem:[%s4 + $0x10] sm:$0xff]
        %v555 = vld [vmem:[%s351] ss:$4 sm:$0x3]
        %s556 = scalar_lea.vmem %s351, 1
        %v557 = vld [vmem:[%s556] ss:$4 sm:$0x3]
        %s558 = scalar_lea.vmem %s351, 2
        %v559 = vld [vmem:[%s558] ss:$4 sm:$0x3]
        %s560 = scalar_lea.vmem %s351, 3
        %v561 = vld [vmem:[%s560] ss:$4 sm:$0x3]
        %562 = vrot.lane.b32.xlu0 %v546, 1
        %v563 = vpop.permute.xlu0 %562
        %564 = vrot.lane.b32.xlu0 %v548, 1
        %v565 = vpop.permute.xlu0 %564
        %566 = vrot.lane.b32.xlu0 %v550, 1
        %v567 = vpop.permute.xlu0 %566
        %568 = vrot.lane.b32.xlu0 %v547, 1
        %v569 = vpop.permute.xlu0 %568
        %570 = vrot.lane.b32.xlu0 %v549, 1
        %v571 = vpop.permute.xlu0 %570
        %572 = vrot.lane.b32.xlu0 %v551, 1
        %v573 = vpop.permute.xlu0 %572
        %v574 = vlaneseq
        %v575 = vand.u32 %v574, 127
        %vm576 = vcmp.lt.s32.totalorder %v575, 1
        %v577 = vsel %vm576, %v563, %v569
        %v578 = vsel %vm576, %v565, %v571
        %v579 = vsel %vm576, %v567, %v573
        %v580 = vsel %vm576, %v569, %v563
        %v581 = vsel %vm576, %v571, %v565
        %v582 = vsel %vm576, %v573, %v567
        %v584 = vlaneseq
        %v585 = vshrl.u32 %v584, 7
        %v586 = vsub.s32 0, %v585
        %v587 = vrot.slane %v555, %v586
        %v588 = vlaneseq
        %v589 = vshrl.u32 %v588, 7
        %v590 = vsub.s32 1, %v589
        %v591 = vrot.slane %v555, %v590
        %v594 = vmul.f32 %v580, %v587
        %v595 = vmul.f32 %v577, %v591
        %v596 = vmul.f32 %v581, %v587
        %v597 = vmul.f32 %v578, %v591
        %v598 = vmul.f32 %v582, %v587
        %v599 = vmul.f32 %v579, %v591
        %600 = vrot.lane.b32.xlu0 %v546, 127
        %v601 = vpop.permute.xlu0 %600
        %602 = vrot.lane.b32.xlu0 %v548, 127
        %v603 = vpop.permute.xlu0 %602
        %604 = vrot.lane.b32.xlu0 %v550, 127
        %v605 = vpop.permute.xlu0 %604
        %606 = vrot.lane.b32.xlu0 %v547, 127
        %v607 = vpop.permute.xlu0 %606
        %608 = vrot.lane.b32.xlu0 %v549, 127
        %v609 = vpop.permute.xlu0 %608
        %610 = vrot.lane.b32.xlu0 %v551, 127
        %v611 = vpop.permute.xlu0 %610
        %vm612 = vcmp.lt.s32.totalorder %v575, 127
        %v613 = vsel %vm612, %v601, %v607
        %v614 = vsel %vm612, %v603, %v609
        %v615 = vsel %vm612, %v605, %v611
        %v616 = vsel %vm612, %v607, %v601
        %v617 = vsel %vm612, %v609, %v603
        %v618 = vsel %vm612, %v611, %v605
        %v620 = vlaneseq
        %v621 = vshrl.u32 %v620, 7
        %v622 = vsub.s32 0, %v621
        %v623 = vrot.slane %v557, %v622
        %v624 = vlaneseq
        %v625 = vshrl.u32 %v624, 7
        %v626 = vsub.s32 1, %v625
        %v627 = vrot.slane %v557, %v626
        %v630 = vmul.f32 %v613, %v623
        %v631 = vmul.f32 %v616, %v627
        %v632 = vmul.f32 %v614, %v623
        %v633 = vmul.f32 %v617, %v627
        %v634 = vmul.f32 %v615, %v623
        %v635 = vmul.f32 %v618, %v627
        %637 = vset.pattern.permute.xlu0 3
        %638 = vperm.xlu0 %637, %v552
        %v639 = vpop.permute.xlu0 %638
        %642 = vset.pattern.permute.xlu0 3
        %643 = vperm.xlu0 %642, %v553
        %v644 = vpop.permute.xlu0 %643
        %647 = vset.pattern.permute.xlu0 3
        %648 = vperm.xlu0 %647, %v554
        %v649 = vpop.permute.xlu0 %648
        %v651 = vmul.f32 %v594, %v639
        %v652 = vmul.f32 %v595, %v639
        %v653 = vmul.f32 %v596, %v644
        %v654 = vmul.f32 %v597, %v644
        %v655 = vmul.f32 %v598, %v649
        %v656 = vmul.f32 %v599, %v649
        %657 = vset.pattern.permute.xlu0 4
        %658 = vperm.xlu0 %657, %v552
        %v659 = vpop.permute.xlu0 %658
        %661 = vset.pattern.permute.xlu0 4
        %662 = vperm.xlu0 %661, %v553
        %v663 = vpop.permute.xlu0 %662
        %665 = vset.pattern.permute.xlu0 4
        %666 = vperm.xlu0 %665, %v554
        %v667 = vpop.permute.xlu0 %666
        %v669 = vmul.f32 %v546, %v659
        %v670 = vmul.f32 %v547, %v659
        %v671 = vmul.f32 %v548, %v663
        %v672 = vmul.f32 %v549, %v663
        %v673 = vmul.f32 %v550, %v667
        %v674 = vmul.f32 %v551, %v667
        %v675 = vadd.f32 %v651, %v669
        %v676 = vadd.f32 %v652, %v670
        %v677 = vadd.f32 %v653, %v671
        %v678 = vadd.f32 %v654, %v672
        %v679 = vadd.f32 %v655, %v673
        %v680 = vadd.f32 %v656, %v674
        %681 = vset.pattern.permute.xlu0 5
        %682 = vperm.xlu0 %681, %v552
        %v683 = vpop.permute.xlu0 %682
        %685 = vset.pattern.permute.xlu0 5
        %686 = vperm.xlu0 %685, %v553
        %v687 = vpop.permute.xlu0 %686
        %689 = vset.pattern.permute.xlu0 5
        %690 = vperm.xlu0 %689, %v554
        %v691 = vpop.permute.xlu0 %690
        %v693 = vmul.f32 %v630, %v683
        %v694 = vmul.f32 %v631, %v683
        %v695 = vmul.f32 %v632, %v687
        %v696 = vmul.f32 %v633, %v687
        %v697 = vmul.f32 %v634, %v691
        %v698 = vmul.f32 %v635, %v691
        %v699 = vadd.f32 %v675, %v693
        %v700 = vadd.f32 %v676, %v694
        %v701 = vadd.f32 %v677, %v695
        %v702 = vadd.f32 %v678, %v696
        %v703 = vadd.f32 %v679, %v697
        %v704 = vadd.f32 %v680, %v698
        %705 = vset.pattern.permute.xlu0 0
        %706 = vperm.xlu0 %705, %v552
        %v707 = vpop.permute.xlu0 %706
        %709 = vset.pattern.permute.xlu0 0
        %710 = vperm.xlu0 %709, %v553
        %v711 = vpop.permute.xlu0 %710
        %713 = vset.pattern.permute.xlu0 0
        %714 = vperm.xlu0 %713, %v554
        %v715 = vpop.permute.xlu0 %714
        %v717 = vmul.f32 %v594, %v707
        %v718 = vmul.f32 %v595, %v707
        %v719 = vmul.f32 %v596, %v711
        %v720 = vmul.f32 %v597, %v711
        %v721 = vmul.f32 %v598, %v715
        %v722 = vmul.f32 %v599, %v715
        %723 = vset.pattern.permute.xlu0 1
        %724 = vperm.xlu0 %723, %v552
        %v725 = vpop.permute.xlu0 %724
        %727 = vset.pattern.permute.xlu0 1
        %728 = vperm.xlu0 %727, %v553
        %v729 = vpop.permute.xlu0 %728
        %731 = vset.pattern.permute.xlu0 1
        %732 = vperm.xlu0 %731, %v554
        %v733 = vpop.permute.xlu0 %732
        %v735 = vmul.f32 %v546, %v725
        %v736 = vmul.f32 %v547, %v725
        %v737 = vmul.f32 %v548, %v729
        %v738 = vmul.f32 %v549, %v729
        %v739 = vmul.f32 %v550, %v733
        %v740 = vmul.f32 %v551, %v733
        %v741 = vadd.f32 %v717, %v735
        %v742 = vadd.f32 %v718, %v736
        %v743 = vadd.f32 %v719, %v737
        %v744 = vadd.f32 %v720, %v738
        %v745 = vadd.f32 %v721, %v739
        %v746 = vadd.f32 %v722, %v740
        %747 = vset.pattern.permute.xlu0 2
        %748 = vperm.xlu0 %747, %v552
        %v749 = vpop.permute.xlu0 %748
        %751 = vset.pattern.permute.xlu0 2
        %752 = vperm.xlu0 %751, %v553
        %v753 = vpop.permute.xlu0 %752
        %755 = vset.pattern.permute.xlu0 2
        %756 = vperm.xlu0 %755, %v554
        %v757 = vpop.permute.xlu0 %756
        %v759 = vmul.f32 %v630, %v749
        %v760 = vmul.f32 %v631, %v749
        %v761 = vmul.f32 %v632, %v753
        %v762 = vmul.f32 %v633, %v753
        %v763 = vmul.f32 %v634, %v757
        %v764 = vmul.f32 %v635, %v757
        %v765 = vadd.f32 %v741, %v759
        %v766 = vadd.f32 %v742, %v760
        %v767 = vadd.f32 %v743, %v761
        %v768 = vadd.f32 %v744, %v762
        %v769 = vadd.f32 %v745, %v763
        %v770 = vadd.f32 %v746, %v764
        %771 = vrot.lane.b32.xlu0 %v765, 16
        %v772 = vpop.permute.xlu0 %771
        %773 = vrot.lane.b32.xlu0 %v767, 16
        %v774 = vpop.permute.xlu0 %773
        %775 = vrot.lane.b32.xlu0 %v769, 16
        %v776 = vpop.permute.xlu0 %775
        %777 = vrot.lane.b32.xlu0 %v766, 16
        %v778 = vpop.permute.xlu0 %777
        %779 = vrot.lane.b32.xlu0 %v768, 16
        %v780 = vpop.permute.xlu0 %779
        %781 = vrot.lane.b32.xlu0 %v770, 16
        %v782 = vpop.permute.xlu0 %781
        %vm783 = vcmp.lt.s32.totalorder %v575, 16
        %v784 = vsel %vm783, %v772, %v778
        %v785 = vsel %vm783, %v774, %v780
        %v786 = vsel %vm783, %v776, %v782
        %v787 = vsel %vm783, %v778, %v772
        %v788 = vsel %vm783, %v780, %v774
        %v789 = vsel %vm783, %v782, %v776
        %v791 = vlaneseq
        %v792 = vshrl.u32 %v791, 7
        %v793 = vsub.s32 0, %v792
        %v794 = vrot.slane %v559, %v793
        %v795 = vlaneseq
        %v796 = vshrl.u32 %v795, 7
        %v797 = vsub.s32 1, %v796
        %v798 = vrot.slane %v559, %v797
        %v801 = vmul.f32 %v787, %v794
        %v802 = vmul.f32 %v784, %v798
        %v803 = vmul.f32 %v788, %v794
        %v804 = vmul.f32 %v785, %v798
        %v805 = vmul.f32 %v789, %v794
        %v806 = vmul.f32 %v786, %v798
        %v807 = vadd.f32 %v699, %v801
        %v808 = vadd.f32 %v700, %v802
        %v809 = vadd.f32 %v701, %v803
        %v810 = vadd.f32 %v702, %v804
        %v811 = vadd.f32 %v703, %v805
        %v812 = vadd.f32 %v704, %v806
        %813 = vset.pattern.permute.xlu0 6
        %814 = vperm.xlu0 %813, %v552
        %v815 = vpop.permute.xlu0 %814
        %817 = vset.pattern.permute.xlu0 6
        %818 = vperm.xlu0 %817, %v553
        %v819 = vpop.permute.xlu0 %818
        %821 = vset.pattern.permute.xlu0 6
        %822 = vperm.xlu0 %821, %v554
        %v823 = vpop.permute.xlu0 %822
        %v825 = vmul.f32 %v594, %v815
        %v826 = vmul.f32 %v595, %v815
        %v827 = vmul.f32 %v596, %v819
        %v828 = vmul.f32 %v597, %v819
        %v829 = vmul.f32 %v598, %v823
        %v830 = vmul.f32 %v599, %v823
        %831 = vset.pattern.permute.xlu0 7
        %832 = vperm.xlu0 %831, %v552
        %v833 = vpop.permute.xlu0 %832
        %835 = vset.pattern.permute.xlu0 7
        %836 = vperm.xlu0 %835, %v553
        %v837 = vpop.permute.xlu0 %836
        %839 = vset.pattern.permute.xlu0 7
        %840 = vperm.xlu0 %839, %v554
        %v841 = vpop.permute.xlu0 %840
        %v843 = vmul.f32 %v546, %v833
        %v844 = vmul.f32 %v547, %v833
        %v845 = vmul.f32 %v548, %v837
        %v846 = vmul.f32 %v549, %v837
        %v847 = vmul.f32 %v550, %v841
        %v848 = vmul.f32 %v551, %v841
        %v849 = vadd.f32 %v825, %v843
        %v850 = vadd.f32 %v826, %v844
        %v851 = vadd.f32 %v827, %v845
        %v852 = vadd.f32 %v828, %v846
        %v853 = vadd.f32 %v829, %v847
        %v854 = vadd.f32 %v830, %v848
        %855 = vset.pattern.permute.xlu0 8
        %856 = vperm.xlu0 %855, %v552
        %v857 = vpop.permute.xlu0 %856
        %859 = vset.pattern.permute.xlu0 8
        %860 = vperm.xlu0 %859, %v553
        %v861 = vpop.permute.xlu0 %860
        %863 = vset.pattern.permute.xlu0 8
        %864 = vperm.xlu0 %863, %v554
        %v865 = vpop.permute.xlu0 %864
        %v867 = vmul.f32 %v630, %v857
        %v868 = vmul.f32 %v631, %v857
        %v869 = vmul.f32 %v632, %v861
        %v870 = vmul.f32 %v633, %v861
        %v871 = vmul.f32 %v634, %v865
        %v872 = vmul.f32 %v635, %v865
        %v873 = vadd.f32 %v849, %v867
        %v874 = vadd.f32 %v850, %v868
        %v875 = vadd.f32 %v851, %v869
        %v876 = vadd.f32 %v852, %v870
        %v877 = vadd.f32 %v853, %v871
        %v878 = vadd.f32 %v854, %v872
        %879 = vrot.lane.b32.xlu0 %v873, 112
        %v880 = vpop.permute.xlu0 %879
        %881 = vrot.lane.b32.xlu0 %v875, 112
        %v882 = vpop.permute.xlu0 %881
        %883 = vrot.lane.b32.xlu0 %v877, 112
        %v884 = vpop.permute.xlu0 %883
        %885 = vrot.lane.b32.xlu0 %v874, 112
        %v886 = vpop.permute.xlu0 %885
        %887 = vrot.lane.b32.xlu0 %v876, 112
        %v888 = vpop.permute.xlu0 %887
        %889 = vrot.lane.b32.xlu0 %v878, 112
        %v890 = vpop.permute.xlu0 %889
        %vm891 = vcmp.lt.s32.totalorder %v575, 112
        %v892 = vsel %vm891, %v880, %v886
        %v893 = vsel %vm891, %v882, %v888
        %v894 = vsel %vm891, %v884, %v890
        %v895 = vsel %vm891, %v886, %v880
        %v896 = vsel %vm891, %v888, %v882
        %v897 = vsel %vm891, %v890, %v884
        %v899 = vlaneseq
        %v900 = vshrl.u32 %v899, 7
        %v901 = vsub.s32 0, %v900
        %v902 = vrot.slane %v561, %v901
        %v903 = vlaneseq
        %v904 = vshrl.u32 %v903, 7
        %v905 = vsub.s32 1, %v904
        %v906 = vrot.slane %v561, %v905
        %v909 = vmul.f32 %v892, %v902
        %v910 = vmul.f32 %v895, %v906
        %v911 = vmul.f32 %v893, %v902
        %v912 = vmul.f32 %v896, %v906
        %v913 = vmul.f32 %v894, %v902
        %v914 = vmul.f32 %v897, %v906
        %v915 = vadd.f32 %v807, %v909
        %v916 = vadd.f32 %v808, %v910
        %v917 = vadd.f32 %v809, %v911
        %v918 = vadd.f32 %v810, %v912
        %v919 = vadd.f32 %v811, %v913
        %v920 = vadd.f32 %v812, %v914
        %v921 = vld [vmem:[%s5] sm:$0xff]
        %v922 = vld [vmem:[%s5 + $0x8] sm:$0xff]
        %v923 = vld [vmem:[%s5 + $0x10] sm:$0xff]
        %925 = vset.pattern.permute.xlu0 0
        %926 = vperm.xlu0 %925, %v921
        %v927 = vpop.permute.xlu0 %926
        %930 = vset.pattern.permute.xlu0 0
        %931 = vperm.xlu0 %930, %v922
        %v932 = vpop.permute.xlu0 %931
        %935 = vset.pattern.permute.xlu0 0
        %936 = vperm.xlu0 %935, %v923
        %v937 = vpop.permute.xlu0 %936
        %v939 = vadd.f32 %v915, %v927
        %v940 = vadd.f32 %v916, %v927
        %v941 = vadd.f32 %v917, %v932
        %v942 = vadd.f32 %v918, %v932
        %v943 = vadd.f32 %v919, %v937
        %v944 = vadd.f32 %v920, %v937
        %v945 = vmax.f32 %v939, 0.0
        %v946 = vmax.f32 %v940, 0.0
        %v947 = vmax.f32 %v941, 0.0
        %v948 = vmax.f32 %v942, 0.0
        %v949 = vmax.f32 %v943, 0.0
        %v950 = vmax.f32 %v944, 0.0
        %v951 = vld [vmem:[%s6] sm:$0xf]
        %v952 = vld [vmem:[%s7] sm:$0xf]
        %954 = vset.pattern.permute.xlu0 0
        %955 = vperm.xlu0 %954, %v952
        %v956 = vpop.permute.xlu0 %955
        %964 = vrot.lane.b32.xlu0 %v945, 112
        %v965 = vpop.permute.xlu0 %964
        %966 = vrot.lane.b32.xlu0 %v946, 112
        %v967 = vpop.permute.xlu0 %966
        %968 = vrot.lane.b32.xlu0 %v947, 112
        %v969 = vpop.permute.xlu0 %968
        %970 = vrot.lane.b32.xlu0 %v948, 112
        %v971 = vpop.permute.xlu0 %970
        %972 = vrot.lane.b32.xlu0 %v949, 112
        %v973 = vpop.permute.xlu0 %972
        %974 = vrot.lane.b32.xlu0 %v950, 112
        %v975 = vpop.permute.xlu0 %974
        %vm976 = vcmask 916480
        %v977 = vsel %vm976, %v965, %v967
        %v978 = vsel %vm976, %v969, %v971
        %v979 = vsel %vm976, %v973, %v975
        %vm983 = vcmask 195584
        %v985 = vsel %vm983, %v951, 0
        %987 = vmatprep.subr.mxu0 0.0
        %988 = vmatpush1.msra.mxu0 %v977
        %989 = vmatprep.subr.mxu0 0.0
        %990 = vmatpush1.msra.mxu0 %v978
        %991 = vmatprep.subr.mxu0 0.0
        %992 = vmatpush1.msra.mxu0 %v979
        %993 = vmatprep.subr.mxu0 0.0
        %994 = vmatpush1.msra.mxu0 0.0
        %995 = vmatprep.subr.mxu0 0.0
        %996 = vmatpush1.msra.mxu0 0.0
        %997 = vmatprep.subr.mxu0 0.0
        %998 = vmatpush1.msra.mxu0 0.0
        %999 = vmatprep.subr.mxu0 0.0
        %1000 = vmatpush1.msra.mxu0 0.0
        %1001 = vmatprep.subr.mxu0 0.0
        %1002 = vmatpush1.msra.mxu0 0.0
        %1003 = vmatprep.subr.mxu0 0.0
        %1004 = vmatpush1.msra.mxu0 0.0
        %1005 = vmatprep.subr.mxu0 0.0
        %1006 = vmatpush1.msra.mxu0 0.0
        %1007 = vmatprep.subr.mxu0 0.0
        %1008 = vmatpush1.msra.mxu0 0.0
        %1009 = vmatprep.subr.mxu0 0.0
        %1010 = vmatpush1.msra.mxu0 0.0
        %1011 = vmatprep.subr.mxu0 0.0
        %1012 = vmatpush1.msra.mxu0 0.0
        %1013 = vmatprep.subr.mxu0 0.0
        %1014 = vmatpush1.msra.mxu0 0.0
        %1015 = vmatprep.subr.mxu0 0.0
        %1016 = vmatpush1.msra.mxu0 0.0
        %1017 = vmatprep.subr.mxu0 0.0
        %1018 = vmatpush1.msra.mxu0 0.0
        %1019 = vmatprep.subr.mxu0 0.0
        %1020 = vmatpush1.msra.mxu0 0.0
        %1021 = vmatprep.subr.mxu0 0.0
        %1022 = vmatpush1.msra.mxu0 0.0
        %1023 = vmatprep.subr.mxu0 0.0
        %1024 = vmatpush1.msra.mxu0 0.0
        %1025 = vmatprep.subr.mxu0 0.0
        %1026 = vmatpush1.msra.mxu0 0.0
        %1027 = vmatprep.subr.mxu0 0.0
        %1028 = vmatpush1.msra.mxu0 0.0
        %1029 = vmatprep.subr.mxu0 0.0
        %1030 = vmatpush1.msra.mxu0 0.0
        %1031 = vmatprep.subr.mxu0 0.0
        %1032 = vmatpush1.msra.mxu0 0.0
        %1033 = vmatprep.subr.mxu0 0.0
        %1034 = vmatpush1.msra.mxu0 0.0
        %1035 = vmatprep.subr.mxu0 0.0
        %1036 = vmatpush1.msra.mxu0 0.0
        %1037 = vmatprep.subr.mxu0 0.0
        %1038 = vmatpush1.msra.mxu0 0.0
        %1039 = vmatprep.subr.mxu0 0.0
        %1040 = vmatpush1.msra.mxu0 0.0
        %1041 = vmatprep.subr.mxu0 0.0
        %1042 = vmatpush1.msra.mxu0 0.0
        %1043 = vmatprep.subr.mxu0 0.0
        %1044 = vmatpush1.msra.mxu0 0.0
        %1045 = vmatprep.subr.mxu0 0.0
        %1046 = vmatpush1.msra.mxu0 0.0
        %1047 = vmatprep.subr.mxu0 0.0
        %1048 = vmatpush1.msra.mxu0 0.0
        %1049 = vmatprep.subr.mxu0 0.0
        %1050 = vmatpush1.msra.mxu0 0.0
        %1051 = vmatprep.mubr.f32.mxu0 0.0
        %1052 = vmatmul.mubr.f32.gmra.mrb[0].mxu0 %v985
        %v1053 = vpop.f32.mrb[0].mxu0
        %v1054 = vadd.f32 %v956, %v1053
        %v1055 = vpop.f32.mrb[0].mxu0
        %1056 = vdwg.mxu0
        %v1057 = vcombine.high %v352, %v352
        %1058 = vrot.lane.b32.xlu0 %v352, 112
        %v1059 = vpop.permute.xlu0 %1058
        %1060 = vrot.lane.b32.xlu0 %v1057, 112
        %v1061 = vpop.permute.xlu0 %1060
        %v1062 = vsel %vm976, %v1059, %v1061
        %v1064 = vadd.f32 %v1054, %v1062
        %1065 = vst [vmem:[%s337] sm:$0xf] %v1064
        %s1066 = sand.u32 %s224, 1
        %s1067 = scalar_lea.sflag [#allocation3], %s1066
        %s1068 = sand.u32 %s224, 1
        %s1069 = smul.addr %s1068, 4
        %s1070 = scalar_lea.vmem [#allocation2], %s1069
        // Predicated region
        $region53: #{tpu_custom_call.1} parent=51 // pred_check
          %p1071 = pneg %p234
        $region54: #{tpu_custom_call.1} parent=51 // pred_check_branch
          %1073 = sbr.rel (%p1071) target = $region56
        $region55: #{tpu_custom_call.1} parent=51 // pred_region
          %s1075 = ssub.s32 64, 64
          %1076 = vsyncadd %s1067, %s1075
          %s1077 = smul.addr %s26, 2
          %s1078 = sadd.s32 %s27, %s1077
          %s1079 = smul.addr %s1078, 64
          %s1080 = scalar_lea.hbm %s8, %s1079
          %s1082 = sshll.u32 %s1070, 4
          %s1083 = int_to_ptr.vmem [resolvable:$true] %s1082
          %1085 = dma.vmem_to_hbm [thread:$0]  %s1083, 64, %s1080, %s1067
        $region56: #{tpu_custom_call.1} parent=51 // pred_fallthru
          _
      $region52: #{tpu_custom_call.1} parent=5 // pred_fallthru
        _
      %p1086 = scmp.le.s32.totalorder 2, %s17
      // Predicated region
      $region57: #{tpu_custom_call.1} parent=5 // pred_check
        %p1087 = pneg %p1086
      $region58: #{tpu_custom_call.1} parent=5 // pred_check_branch
        %1089 = sbr.rel (%p1087) target = $region60
      $region59: #{tpu_custom_call.1} parent=5 // pred_region
        %s1090 = ssub.s32 %s17, 2
        // Predicated region
        $region61: #{tpu_custom_call.1} parent=59 // pred_check
          %p1091 = pneg %p240
        $region62: #{tpu_custom_call.1} parent=59 // pred_check_branch
          %1093 = sbr.rel (%p1091) target = $region64
        $region63: #{tpu_custom_call.1} parent=59 // pred_region
          %s1094 = sand.u32 %s225, 1
          %s1095 = scalar_lea.sflag [#allocation3], %s1094
          %s1096 = sand.u32 %s225, 1
          %s1097 = smul.addr %s1096, 4
          %s1098 = scalar_lea.vmem [#allocation2], %s1097
          %1099 = dma.done %s1095, 64
        $region64: #{tpu_custom_call.1} parent=59 // pred_fallthru
          _
      $region60: #{tpu_custom_call.1} parent=5 // pred_fallthru
        _
    $region6: #{tpu_custom_call.1} parent=1 // loop_footer
      %s21 = sadd.s32 1, %s17
    $region7: #{tpu_custom_call.1} parent=1 // loop_footer_branch
      %16 = sbr.rel target = $region3
    $region8: #{tpu_custom_call.1} parent=1 // loop_exit
      _
    %1100 = vsyncpa [#allocation3], 1
    %s1101 = scalar_lea.sflag [#allocation3], 1
    %1102 = vsyncpa %s1101, 1

// kernel: tpu_custom_call.1
$region0: #{tpu_custom_call.1}
  #allocation0 [shape = 'u32[]', space=smem, size = 0x4, offset = 0x4, fixed_abs, tag = 'smem constant byte address 0x4 - core index']
  #allocation1 [shape = 'u32[144,128]{1,0:T(1,128)}', space=vmem, size = 0x12000, scoped, tag = 'internal scratch']
  %s0 = inlined_call_operand.vmem [shape: f32[2,2,4,256], index: 0, kind: input, shape index: {}]
  %s1 = inlined_call_operand.vmem [shape: f32[2,4,256], index: 1, kind: input, shape index: {}]
  %s2 = inlined_call_operand.vmem [shape: f32[24,4], index: 2, kind: input, shape index: {}]
  %s3 = inlined_call_operand.vmem [shape: f32[24,1], index: 3, kind: input, shape index: {}]
  %s4 = inlined_call_operand.vmem [shape: f32[24,9], index: 4, kind: input, shape index: {}]
  %s5 = inlined_call_operand.vmem [shape: f32[24,1], index: 5, kind: input, shape index: {}]
  %s6 = inlined_call_operand.vmem [shape: f32[4,24], index: 6, kind: input, shape index: {}]
  %s7 = inlined_call_operand.vmem [shape: f32[4,1], index: 7, kind: input, shape index: {}]
  %s8 = inlined_call_operand.hbm [shape: f32[2,4,256], index: 8, kind: output, shape index: {}]
  %s9 = sld [smem:[#allocation0]]
  $region65: #{tpu_custom_call.1} parent=0
    _
  %s11 = ssub.s32 1, %s9
  %s12 = scalar_select 0, %s11, %s9
  $region1: #{tpu_custom_call.1} parent=0
    #allocation2 [shape = 'u8[4096]{0}', space=vmem, size = 0x1000, scoped, tag = 'output window, operand 0']
    #allocation3 [shape = 's32[2]{0}', space=sflag, size = 0x8, scoped, tag = 'scoped memory for tpu_custom_call.1']
    %13 = vsyncpa [#allocation3], 0
    %s14 = scalar_lea.sflag [#allocation3], 1
    %15 = vsyncpa %s14, 0
    loop: start=0, step=1, limit=6
    $region2: #{tpu_custom_call.1} parent=1 // loop_pre_header
      _
    $region3: #{tpu_custom_call.1} parent=1 // loop_header
      %s17 = sphi 0, %s21
      %p18 = scmp.ge.s32.totalorder %s17, 6
      %s24 = sphi 0, %s36
      %s25 = sphi 0, %s32
      %s26 = sphi 0, %s24
      %s27 = sphi 0, %s25
      %s28 = sphi 0, %s26
      %s29 = sphi 0, %s27
      %s41 = sphi 0, %s43
      %s44 = sphi 0, %s41
      %s45 = sphi 0, %s44
      %s61 = sphi 0, %s45
      %s67 = sphi 0, %s69
      %s70 = sphi 0, %s67
      %s71 = sphi 0, %s70
      %s87 = sphi 0, %s71
      %s91 = sphi 0, %s91
      %s93 = sphi 0, %s91
      %s94 = sphi 0, %s93
      %s108 = sphi 0, %s94
      %s112 = sphi 0, %s112
      %s114 = sphi 0, %s112
      %s115 = sphi 0, %s114
      %s129 = sphi 0, %s115
      %s133 = sphi 0, %s133
      %s135 = sphi 0, %s133
      %s136 = sphi 0, %s135
      %s150 = sphi 0, %s136
      %s154 = sphi 0, %s154
      %s156 = sphi 0, %s154
      %s157 = sphi 0, %s156
      %s171 = sphi 0, %s157
      %s175 = sphi 0, %s175
      %s177 = sphi 0, %s175
      %s178 = sphi 0, %s177
      %s192 = sphi 0, %s178
      %s196 = sphi 0, %s196
      %s198 = sphi 0, %s196
      %s199 = sphi 0, %s198
      %s213 = sphi 0, %s199
      %s221 = sphi 0, %s223
      %s224 = sphi 0, %s221
      %s225 = sphi 0, %s224
      %s241 = sphi 0, %s225
    $region4: #{tpu_custom_call.1} parent=1 // loop_header_branch
      %20 = sbr.rel (%p18) target = $region8
    $region5: #{tpu_custom_call.1} parent=1 // loop_body
      %s22 = ssub.s32 %s17, 1
      %s23 = ssub.s32 %s17, 2
      %s30 = sadd.s32 1, %s25
      %p31 = scmp.ge.s32.totalorder %s30, 2
      %s32 = scalar_select %p31, 0, %s30
      %s33 = sadd.s32 1, %s24
      %s34 = scalar_select %p31, %s33, %s24
      %p35 = scmp.ge.s32.totalorder %s34, 2
      %s36 = scalar_select %p35, 0, %s34
      %s37 = ssub.s32 %s24, %s36
      %s38 = ssub.s32 %s25, %s32
      %s39 = sor.u32 %s37, %s38
      %p40 = scmp.eq.s32.totalorder %s39, 0
      %s42 = sadd.s32 %s41, 1
      %s43 = scalar_select %p40, %s41, %s42
      %p46 = pneg %p40
      %p47 = scmp.eq.s32.totalorder %s17, 3
      %p48 = por %p46, %p47
      %p49 = scmp.ne.s32.totalorder %s41, %s44
      %p50 = scmp.eq.s32.totalorder %s17, 0
      %p51 = por %p49, %p50
      %p52 = scmp.ne.s32.totalorder %s41, %s44
      %p53 = scmp.eq.s32.totalorder %s22, 3
      %p54 = por %p52, %p53
      %p55 = scmp.ne.s32.totalorder %s44, %s45
      %p56 = scmp.eq.s32.totalorder %s22, 0
      %p57 = por %p55, %p56
      %p58 = scmp.ne.s32.totalorder %s44, %s45
      %p59 = scmp.eq.s32.totalorder %s23, 3
      %p60 = por %p58, %p59
      %p62 = scmp.ne.s32.totalorder %s45, %s61
      %p63 = scmp.eq.s32.totalorder %s23, 0
      %p64 = por %p62, %p63
      %s65 = ssub.s32 %s25, %s32
      %p66 = scmp.eq.s32.totalorder %s65, 0
      %s68 = sadd.s32 %s67, 1
      %s69 = scalar_select %p66, %s67, %s68
      %p72 = pneg %p66
      %p73 = scmp.eq.s32.totalorder %s17, 3
      %p74 = por %p72, %p73
      %p75 = scmp.ne.s32.totalorder %s67, %s70
      %p76 = scmp.eq.s32.totalorder %s17, 0
      %p77 = por %p75, %p76
      %p78 = scmp.ne.s32.totalorder %s67, %s70
      %p79 = scmp.eq.s32.totalorder %s22, 3
      %p80 = por %p78, %p79
      %p81 = scmp.ne.s32.totalorder %s70, %s71
      %p82 = scmp.eq.s32.totalorder %s22, 0
      %p83 = por %p81, %p82
      %p84 = scmp.ne.s32.totalorder %s70, %s71
      %p85 = scmp.eq.s32.totalorder %s23, 3
      %p86 = por %p84, %p85
      %p88 = scmp.ne.s32.totalorder %s71, %s87
      %p89 = scmp.eq.s32.totalorder %s23, 0
      %p90 = por %p88, %p89
      %s92 = sadd.s32 %s91, 1
      %p95 = scmp.eq.s32.totalorder %s17, 3
      %p96 = scmp.ne.s32.totalorder %s91, %s93
      %p97 = scmp.eq.s32.totalorder %s17, 0
      %p98 = por %p96, %p97
      %p99 = scmp.ne.s32.totalorder %s91, %s93
      %p100 = scmp.eq.s32.totalorder %s22, 3
      %p101 = por %p99, %p100
      %p102 = scmp.ne.s32.totalorder %s93, %s94
      %p103 = scmp.eq.s32.totalorder %s22, 0
      %p104 = por %p102, %p103
      %p105 = scmp.ne.s32.totalorder %s93, %s94
      %p106 = scmp.eq.s32.totalorder %s23, 3
      %p107 = por %p105, %p106
      %p109 = scmp.ne.s32.totalorder %s94, %s108
      %p110 = scmp.eq.s32.totalorder %s23, 0
      %p111 = por %p109, %p110
      %s113 = sadd.s32 %s112, 1
      %p116 = scmp.eq.s32.totalorder %s17, 3
      %p117 = scmp.ne.s32.totalorder %s112, %s114
      %p118 = scmp.eq.s32.totalorder %s17, 0
      %p119 = por %p117, %p118
      %p120 = scmp.ne.s32.totalorder %s112, %s114
      %p121 = scmp.eq.s32.totalorder %s22, 3
      %p122 = por %p120, %p121
      %p123 = scmp.ne.s32.totalorder %s114, %s115
      %p124 = scmp.eq.s32.totalorder %s22, 0
      %p125 = por %p123, %p124
      %p126 = scmp.ne.s32.totalorder %s114, %s115
      %p127 = scmp.eq.s32.totalorder %s23, 3
      %p128 = por %p126, %p127
      %p130 = scmp.ne.s32.totalorder %s115, %s129
      %p131 = scmp.eq.s32.totalorder %s23, 0
      %p132 = por %p130, %p131
      %s134 = sadd.s32 %s133, 1
      %p137 = scmp.eq.s32.totalorder %s17, 3
      %p138 = scmp.ne.s32.totalorder %s133, %s135
      %p139 = scmp.eq.s32.totalorder %s17, 0
      %p140 = por %p138, %p139
      %p141 = scmp.ne.s32.totalorder %s133, %s135
      %p142 = scmp.eq.s32.totalorder %s22, 3
      %p143 = por %p141, %p142
      %p144 = scmp.ne.s32.totalorder %s135, %s136
      %p145 = scmp.eq.s32.totalorder %s22, 0
      %p146 = por %p144, %p145
      %p147 = scmp.ne.s32.totalorder %s135, %s136
      %p148 = scmp.eq.s32.totalorder %s23, 3
      %p149 = por %p147, %p148
      %p151 = scmp.ne.s32.totalorder %s136, %s150
      %p152 = scmp.eq.s32.totalorder %s23, 0
      %p153 = por %p151, %p152
      %s155 = sadd.s32 %s154, 1
      %p158 = scmp.eq.s32.totalorder %s17, 3
      %p159 = scmp.ne.s32.totalorder %s154, %s156
      %p160 = scmp.eq.s32.totalorder %s17, 0
      %p161 = por %p159, %p160
      %p162 = scmp.ne.s32.totalorder %s154, %s156
      %p163 = scmp.eq.s32.totalorder %s22, 3
      %p164 = por %p162, %p163
      %p165 = scmp.ne.s32.totalorder %s156, %s157
      %p166 = scmp.eq.s32.totalorder %s22, 0
      %p167 = por %p165, %p166
      %p168 = scmp.ne.s32.totalorder %s156, %s157
      %p169 = scmp.eq.s32.totalorder %s23, 3
      %p170 = por %p168, %p169
      %p172 = scmp.ne.s32.totalorder %s157, %s171
      %p173 = scmp.eq.s32.totalorder %s23, 0
      %p174 = por %p172, %p173
      %s176 = sadd.s32 %s175, 1
      %p179 = scmp.eq.s32.totalorder %s17, 3
      %p180 = scmp.ne.s32.totalorder %s175, %s177
      %p181 = scmp.eq.s32.totalorder %s17, 0
      %p182 = por %p180, %p181
      %p183 = scmp.ne.s32.totalorder %s175, %s177
      %p184 = scmp.eq.s32.totalorder %s22, 3
      %p185 = por %p183, %p184
      %p186 = scmp.ne.s32.totalorder %s177, %s178
      %p187 = scmp.eq.s32.totalorder %s22, 0
      %p188 = por %p186, %p187
      %p189 = scmp.ne.s32.totalorder %s177, %s178
      %p190 = scmp.eq.s32.totalorder %s23, 3
      %p191 = por %p189, %p190
      %p193 = scmp.ne.s32.totalorder %s178, %s192
      %p194 = scmp.eq.s32.totalorder %s23, 0
      %p195 = por %p193, %p194
      %s197 = sadd.s32 %s196, 1
      %p200 = scmp.eq.s32.totalorder %s17, 3
      %p201 = scmp.ne.s32.totalorder %s196, %s198
      %p202 = scmp.eq.s32.totalorder %s17, 0
      %p203 = por %p201, %p202
      %p204 = scmp.ne.s32.totalorder %s196, %s198
      %p205 = scmp.eq.s32.totalorder %s22, 3
      %p206 = por %p204, %p205
      %p207 = scmp.ne.s32.totalorder %s198, %s199
      %p208 = scmp.eq.s32.totalorder %s22, 0
      %p209 = por %p207, %p208
      %p210 = scmp.ne.s32.totalorder %s198, %s199
      %p211 = scmp.eq.s32.totalorder %s23, 3
      %p212 = por %p210, %p211
      %p214 = scmp.ne.s32.totalorder %s199, %s213
      %p215 = scmp.eq.s32.totalorder %s23, 0
      %p216 = por %p214, %p215
      %s217 = ssub.s32 %s24, %s36
      %s218 = ssub.s32 %s25, %s32
      %s219 = sor.u32 %s217, %s218
      %p220 = scmp.eq.s32.totalorder %s219, 0
      %s222 = sadd.s32 %s221, 1
      %s223 = scalar_select %p220, %s221, %s222
      %p226 = pneg %p220
      %p227 = scmp.eq.s32.totalorder %s17, 3
      %p228 = por %p226, %p227
      %p229 = scmp.ne.s32.totalorder %s221, %s224
      %p230 = scmp.eq.s32.totalorder %s17, 0
      %p231 = por %p229, %p230
      %p232 = scmp.ne.s32.totalorder %s221, %s224
      %p233 = scmp.eq.s32.totalorder %s22, 3
      %p234 = por %p232, %p233
      %p235 = scmp.ne.s32.totalorder %s224, %s225
      %p236 = scmp.eq.s32.totalorder %s22, 0
      %p237 = por %p235, %p236
      %p238 = scmp.ne.s32.totalorder %s224, %s225
      %p239 = scmp.eq.s32.totalorder %s23, 3
      %p240 = por %p238, %p239
      %p242 = scmp.ne.s32.totalorder %s225, %s241
      %p243 = scmp.eq.s32.totalorder %s23, 0
      %p244 = por %p242, %p243
      %p245 = scmp.le.s32.totalorder 1, %s17
      %p246 = scmp.lt.s32.totalorder %s17, 5
      %p247 = pnand %p245, %p246
      %p248 = pneg %p247
      // Predicated region
      $region9: #{tpu_custom_call.1} parent=5 // pred_check
        _
      $region10: #{tpu_custom_call.1} parent=5 // pred_check_branch
        %250 = sbr.rel (%p247) target = $region12
      $region11: #{tpu_custom_call.1} parent=5 // pred_region
        %s251 = ssub.s32 %s17, 1
        // Predicated region
        $region13: #{tpu_custom_call.1} parent=11 // pred_check
          %p252 = pneg %p104
        $region14: #{tpu_custom_call.1} parent=11 // pred_check_branch
          %254 = sbr.rel (%p252) target = $region16
        $region15: #{tpu_custom_call.1} parent=11 // pred_region
          _
        $region16: #{tpu_custom_call.1} parent=11 // pred_fallthru
          _
        // Predicated region
        $region17: #{tpu_custom_call.1} parent=11 // pred_check
          %p255 = pneg %p125
        $region18: #{tpu_custom_call.1} parent=11 // pred_check_branch
          %257 = sbr.rel (%p255) target = $region20
        $region19: #{tpu_custom_call.1} parent=11 // pred_region
          _
        $region20: #{tpu_custom_call.1} parent=11 // pred_fallthru
          _
        // Predicated region
        $region21: #{tpu_custom_call.1} parent=11 // pred_check
          %p258 = pneg %p146
        $region22: #{tpu_custom_call.1} parent=11 // pred_check_branch
          %260 = sbr.rel (%p258) target = $region24
        $region23: #{tpu_custom_call.1} parent=11 // pred_region
          _
        $region24: #{tpu_custom_call.1} parent=11 // pred_fallthru
          _
        // Predicated region
        $region25: #{tpu_custom_call.1} parent=11 // pred_check
          %p261 = pneg %p167
        $region26: #{tpu_custom_call.1} parent=11 // pred_check_branch
          %263 = sbr.rel (%p261) target = $region28
        $region27: #{tpu_custom_call.1} parent=11 // pred_region
          _
        $region28: #{tpu_custom_call.1} parent=11 // pred_fallthru
          _
        // Predicated region
        $region29: #{tpu_custom_call.1} parent=11 // pred_check
          %p264 = pneg %p188
        $region30: #{tpu_custom_call.1} parent=11 // pred_check_branch
          %266 = sbr.rel (%p264) target = $region32
        $region31: #{tpu_custom_call.1} parent=11 // pred_region
          _
        $region32: #{tpu_custom_call.1} parent=11 // pred_fallthru
          _
        // Predicated region
        $region33: #{tpu_custom_call.1} parent=11 // pred_check
          %p267 = pneg %p209
        $region34: #{tpu_custom_call.1} parent=11 // pred_check_branch
          %269 = sbr.rel (%p267) target = $region36
        $region35: #{tpu_custom_call.1} parent=11 // pred_region
          _
        $region36: #{tpu_custom_call.1} parent=11 // pred_fallthru
          _
      $region12: #{tpu_custom_call.1} parent=5 // pred_fallthru
        _
      %p270 = scmp.lt.s32.totalorder %s17, 4
      // Predicated region
      $region37: #{tpu_custom_call.1} parent=5 // pred_check
        %p271 = pneg %p270
      $region38: #{tpu_custom_call.1} parent=5 // pred_check_branch
        %273 = sbr.rel (%p271) target = $region40
      $region39: #{tpu_custom_call.1} parent=5 // pred_region
        // Predicated region
        $region41: #{tpu_custom_call.1} parent=39 // pred_check
          %p274 = pneg %p51
        $region42: #{tpu_custom_call.1} parent=39 // pred_check_branch
          %276 = sbr.rel (%p274) target = $region44
        $region43: #{tpu_custom_call.1} parent=39 // pred_region
          %p277 = scmp.lt.s32.totalorder %s24, 1
          %s278 = scalar_select %p277, %s24, 1
          %p279 = scmp.lt.s32.totalorder %s25, 1
          %s280 = scalar_select %p279, %s25, 1
          %s281 = smul.addr %s280, 2
          %s282 = smul.addr %s278, 4
          %s283 = sadd.s32 %s281, %s282
          %s284 = smul.addr %s283, 4
          %s285 = scalar_lea.vmem %s0, %s284
        $region44: #{tpu_custom_call.1} parent=39 // pred_fallthru
          _
        // Predicated region
        $region45: #{tpu_custom_call.1} parent=39 // pred_check
          %p286 = pneg %p77
        $region46: #{tpu_custom_call.1} parent=39 // pred_check_branch
          %288 = sbr.rel (%p286) target = $region48
        $region47: #{tpu_custom_call.1} parent=39 // pred_region
          %p289 = scmp.lt.s32.totalorder %s25, 1
          %s290 = scalar_select %p289, %s25, 1
          %s291 = smul.addr %s290, 2
          %s292 = smul.addr %s291, 4
          %s293 = scalar_lea.vmem %s1, %s292
        $region48: #{tpu_custom_call.1} parent=39 // pred_fallthru
          _
      $region40: #{tpu_custom_call.1} parent=5 // pred_fallthru
        _
      %p294 = scmp.le.s32.totalorder 1, %s17
      %p295 = scmp.lt.s32.totalorder %s17, 5
      %p296 = pnand %p294, %p295
      %p297 = pneg %p296
      // Predicated region
      $region49: #{tpu_custom_call.1} parent=5 // pred_check
        _
      $region50: #{tpu_custom_call.1} parent=5 // pred_check_branch
        %299 = sbr.rel (%p296) target = $region52
      $region51: #{tpu_custom_call.1} parent=5 // pred_region
        %s300 = ssub.s32 %s17, 1
        %p301 = scmp.lt.s32.totalorder %s26, 1
        %s302 = scalar_select %p301, %s26, 1
        %p303 = scmp.lt.s32.totalorder %s27, 1
        %s304 = scalar_select %p303, %s27, 1
        %s305 = smul.addr %s304, 2
        %s306 = smul.addr %s302, 4
        %s307 = sadd.s32 %s305, %s306
        %s308 = smul.addr %s307, 4
        %s309 = scalar_lea.vmem %s0, %s308
        %p310 = pneg %p57
        %p311 = pneg %p54
        %p312 = scmp.lt.s32.totalorder %s27, 1
        %s313 = scalar_select %p312, %s27, 1
        %s314 = smul.addr %s313, 2
        %s315 = smul.addr %s314, 4
        %s316 = scalar_lea.vmem %s1, %s315
        %p317 = pneg %p83
        %p318 = pneg %p80
        %p319 = pneg %p104
        %p320 = pneg %p101
        %p321 = pneg %p125
        %p322 = pneg %p122
        %p323 = pneg %p146
        %p324 = pneg %p143
        %p325 = pneg %p167
        %p326 = pneg %p164
        %p327 = pneg %p188
        %p328 = pneg %p185
        %p329 = pneg %p209
        %p330 = pneg %p206
        %p331 = pneg %p237
        %p332 = pneg %p234
        %s333 = sand.u32 %s224, 1
        %s334 = scalar_lea.sflag [#allocation3], %s333
        %s335 = sand.u32 %s224, 1
        %s336 = smul.addr %s335, 4
        %s337 = scalar_lea.vmem [#allocation2], %s336
        %p338 = scmp.lt.s32.totalorder %s26, 1
        %s339 = scalar_select %p338, %s26, 1
        %p340 = scmp.lt.s32.totalorder %s27, 1
        %s341 = scalar_select %p340, %s27, 1
        %s342 = smul.addr %s341, 2
        %s343 = smul.addr %s339, 4
        %s344 = sadd.s32 %s342, %s343
        %s345 = smul.addr %s344, 4
        %s346 = scalar_lea.vmem %s0, %s345
        %p347 = scmp.lt.s32.totalorder %s27, 1
        %s348 = scalar_select %p347, %s27, 1
        %s349 = smul.addr %s348, 2
        %s350 = smul.addr %s349, 4
        %s351 = scalar_lea.vmem %s1, %s350
        %v352 = vld [vmem:[%s346] sm:$0xff]
        %v353 = vld [vmem:[%s2] sm:$0xff]
        %v354 = vld [vmem:[%s2 + $0x8] sm:$0xff]
        %v355 = vld [vmem:[%s2 + $0x10] sm:$0xff]
        %v357 = vlaneseq
        %v358 = vshrl.u32 %v357, 7
        %v359 = vsub.s32 0, %v358
        %v360 = vrot.slane %v352, %v359
        %v361 = vlaneseq
        %v362 = vshrl.u32 %v361, 7
        %v363 = vsub.s32 4, %v362
        %v364 = vrot.slane %v352, %v363
        %v367 = vlaneseq
        %v368 = vshrl.u32 %v367, 7
        %v369 = vsub.s32 0, %v368
        %v370 = vrot.slane %v360, %v369
        %v371 = vlaneseq
        %v372 = vshrl.u32 %v371, 7
        %v373 = vsub.s32 0, %v372
        %v374 = vrot.slane %v364, %v373
        %376 = vset.pattern.permute.xlu0 0
        %377 = vperm.xlu0 %376, %v353
        %v378 = vpop.permute.xlu0 %377
        %381 = vset.pattern.permute.xlu0 0
        %382 = vperm.xlu0 %381, %v354
        %v383 = vpop.permute.xlu0 %382
        %386 = vset.pattern.permute.xlu0 0
        %387 = vperm.xlu0 %386, %v355
        %v388 = vpop.permute.xlu0 %387
        %v390 = vmul.f32 %v370, %v378
        %v391 = vmul.f32 %v374, %v378
        %v392 = vmul.f32 %v370, %v383
        %v393 = vmul.f32 %v374, %v383
        %v394 = vmul.f32 %v370, %v388
        %v395 = vmul.f32 %v374, %v388
        %v396 = vlaneseq
        %v397 = vshrl.u32 %v396, 7
        %v398 = vsub.s32 1, %v397
        %v399 = vrot.slane %v352, %v398
        %v400 = vlaneseq
        %v401 = vshrl.u32 %v400, 7
        %v402 = vsub.s32 5, %v401
        %v403 = vrot.slane %v352, %v402
        %v406 = vlaneseq
        %v407 = vshrl.u32 %v406, 7
        %v408 = vsub.s32 1, %v407
        %v409 = vrot.slane %v399, %v408
        %v410 = vlaneseq
        %v411 = vshrl.u32 %v410, 7
        %v412 = vsub.s32 1, %v411
        %v413 = vrot.slane %v403, %v412
        %414 = vset.pattern.permute.xlu0 1
        %415 = vperm.xlu0 %414, %v353
        %v416 = vpop.permute.xlu0 %415
        %418 = vset.pattern.permute.xlu0 1
        %419 = vperm.xlu0 %418, %v354
        %v420 = vpop.permute.xlu0 %419
        %422 = vset.pattern.permute.xlu0 1
        %423 = vperm.xlu0 %422, %v355
        %v424 = vpop.permute.xlu0 %423
        %v426 = vmul.f32 %v409, %v416
        %v427 = vmul.f32 %v413, %v416
        %v428 = vmul.f32 %v409, %v420
        %v429 = vmul.f32 %v413, %v420
        %v430 = vmul.f32 %v409, %v424
        %v431 = vmul.f32 %v413, %v424
        %v432 = vadd.f32 %v390, %v426
        %v433 = vadd.f32 %v391, %v427
        %v434 = vadd.f32 %v392, %v428
        %v435 = vadd.f32 %v393, %v429
        %v436 = vadd.f32 %v394, %v430
        %v437 = vadd.f32 %v395, %v431
        %v438 = vlaneseq
        %v439 = vshrl.u32 %v438, 7
        %v440 = vsub.s32 2, %v439
        %v441 = vrot.slane %v352, %v440
        %v442 = vlaneseq
        %v443 = vshrl.u32 %v442, 7
        %v444 = vsub.s32 6, %v443
        %v445 = vrot.slane %v352, %v444
        %v448 = vlaneseq
        %v449 = vshrl.u32 %v448, 7
        %v450 = vsub.s32 2, %v449
        %v451 = vrot.slane %v441, %v450
        %v452 = vlaneseq
        %v453 = vshrl.u32 %v452, 7
        %v454 = vsub.s32 2, %v453
        %v455 = vrot.slane %v445, %v454
        %456 = vset.pattern.permute.xlu0 2
        %457 = vperm.xlu0 %456, %v353
        %v458 = vpop.permute.xlu0 %457
        %460 = vset.pattern.permute.xlu0 2
        %461 = vperm.xlu0 %460, %v354
        %v462 = vpop.permute.xlu0 %461
        %464 = vset.pattern.permute.xlu0 2
        %465 = vperm.xlu0 %464, %v355
        %v466 = vpop.permute.xlu0 %465
        %v468 = vmul.f32 %v451, %v458
        %v469 = vmul.f32 %v455, %v458
        %v470 = vmul.f32 %v451, %v462
        %v471 = vmul.f32 %v455, %v462
        %v472 = vmul.f32 %v451, %v466
        %v473 = vmul.f32 %v455, %v466
        %v474 = vadd.f32 %v432, %v468
        %v475 = vadd.f32 %v433, %v469
        %v476 = vadd.f32 %v434, %v470
        %v477 = vadd.f32 %v435, %v471
        %v478 = vadd.f32 %v436, %v472
        %v479 = vadd.f32 %v437, %v473
        %v480 = vlaneseq
        %v481 = vshrl.u32 %v480, 7
        %v482 = vsub.s32 3, %v481
        %v483 = vrot.slane %v352, %v482
        %v484 = vlaneseq
        %v485 = vshrl.u32 %v484, 7
        %v486 = vsub.s32 7, %v485
        %v487 = vrot.slane %v352, %v486
        %v490 = vlaneseq
        %v491 = vshrl.u32 %v490, 7
        %v492 = vsub.s32 3, %v491
        %v493 = vrot.slane %v483, %v492
        %v494 = vlaneseq
        %v495 = vshrl.u32 %v494, 7
        %v496 = vsub.s32 3, %v495
        %v497 = vrot.slane %v487, %v496
        %498 = vset.pattern.permute.xlu0 3
        %499 = vperm.xlu0 %498, %v353
        %v500 = vpop.permute.xlu0 %499
        %502 = vset.pattern.permute.xlu0 3
        %503 = vperm.xlu0 %502, %v354
        %v504 = vpop.permute.xlu0 %503
        %506 = vset.pattern.permute.xlu0 3
        %507 = vperm.xlu0 %506, %v355
        %v508 = vpop.permute.xlu0 %507
        %v510 = vmul.f32 %v493, %v500
        %v511 = vmul.f32 %v497, %v500
        %v512 = vmul.f32 %v493, %v504
        %v513 = vmul.f32 %v497, %v504
        %v514 = vmul.f32 %v493, %v508
        %v515 = vmul.f32 %v497, %v508
        %v516 = vadd.f32 %v474, %v510
        %v517 = vadd.f32 %v475, %v511
        %v518 = vadd.f32 %v476, %v512
        %v519 = vadd.f32 %v477, %v513
        %v520 = vadd.f32 %v478, %v514
        %v521 = vadd.f32 %v479, %v515
        %v522 = vld [vmem:[%s3] sm:$0xff]
        %v523 = vld [vmem:[%s3 + $0x8] sm:$0xff]
        %v524 = vld [vmem:[%s3 + $0x10] sm:$0xff]
        %526 = vset.pattern.permute.xlu0 0
        %527 = vperm.xlu0 %526, %v522
        %v528 = vpop.permute.xlu0 %527
        %531 = vset.pattern.permute.xlu0 0
        %532 = vperm.xlu0 %531, %v523
        %v533 = vpop.permute.xlu0 %532
        %536 = vset.pattern.permute.xlu0 0
        %537 = vperm.xlu0 %536, %v524
        %v538 = vpop.permute.xlu0 %537
        %v540 = vadd.f32 %v516, %v528
        %v541 = vadd.f32 %v517, %v528
        %v542 = vadd.f32 %v518, %v533
        %v543 = vadd.f32 %v519, %v533
        %v544 = vadd.f32 %v520, %v538
        %v545 = vadd.f32 %v521, %v538
        %v546 = vmax.f32 %v540, 0.0
        %v547 = vmax.f32 %v541, 0.0
        %v548 = vmax.f32 %v542, 0.0
        %v549 = vmax.f32 %v543, 0.0
        %v550 = vmax.f32 %v544, 0.0
        %v551 = vmax.f32 %v545, 0.0
        %v552 = vld [vmem:[%s4] sm:$0xff]
        %v553 = vld [vmem:[%s4 + $0x8] sm:$0xff]
        %v554 = vld [vmem:[%s4 + $0x10] sm:$0xff]
        %v555 = vld [vmem:[%s351] ss:$4 sm:$0x3]
        %s556 = scalar_lea.vmem %s351, 1
        %v557 = vld [vmem:[%s556] ss:$4 sm:$0x3]
        %s558 = scalar_lea.vmem %s351, 2
        %v559 = vld [vmem:[%s558] ss:$4 sm:$0x3]
        %s560 = scalar_lea.vmem %s351, 3
        %v561 = vld [vmem:[%s560] ss:$4 sm:$0x3]
        %565 = vrot.lane.b32.xlu0 %v547, 1
        %v566 = vpop.permute.xlu0 %565
        %567 = vrot.lane.b32.xlu0 %v549, 1
        %v568 = vpop.permute.xlu0 %567
        %569 = vrot.lane.b32.xlu0 %v551, 1
        %v570 = vpop.permute.xlu0 %569
        %577 = vrot.lane.b32.xlu0 %v546, 1
        %v578 = vpop.permute.xlu0 %577
        %579 = vrot.lane.b32.xlu0 %v548, 1
        %v580 = vpop.permute.xlu0 %579
        %581 = vrot.lane.b32.xlu0 %v550, 1
        %v582 = vpop.permute.xlu0 %581
        %vm583 = vcmask 7168
        %v584 = vsel %vm583, %v578, %v566
        %v585 = vsel %vm583, %v580, %v568
        %v586 = vsel %vm583, %v582, %v570
        %v593 = vsel %vm583, %v566, %v578
        %v594 = vsel %vm583, %v568, %v580
        %v595 = vsel %vm583, %v570, %v582
        %v597 = vlaneseq
        %v598 = vshrl.u32 %v597, 7
        %v599 = vsub.s32 0, %v598
        %v600 = vrot.slane %v555, %v599
        %v601 = vlaneseq
        %v602 = vshrl.u32 %v601, 7
        %v603 = vsub.s32 1, %v602
        %v604 = vrot.slane %v555, %v603
        %v607 = vmul.f32 %v593, %v600
        %v608 = vmul.f32 %v584, %v604
        %v609 = vmul.f32 %v594, %v600
        %v610 = vmul.f32 %v585, %v604
        %v611 = vmul.f32 %v595, %v600
        %v612 = vmul.f32 %v586, %v604
        %613 = vrot.lane.b32.xlu0 %v546, 127
        %v614 = vpop.permute.xlu0 %613
        %615 = vrot.lane.b32.xlu0 %v547, 127
        %v616 = vpop.permute.xlu0 %615
        %617 = vrot.lane.b32.xlu0 %v548, 127
        %v618 = vpop.permute.xlu0 %617
        %619 = vrot.lane.b32.xlu0 %v549, 127
        %v620 = vpop.permute.xlu0 %619
        %621 = vrot.lane.b32.xlu0 %v550, 127
        %v622 = vpop.permute.xlu0 %621
        %623 = vrot.lane.b32.xlu0 %v551, 127
        %v624 = vpop.permute.xlu0 %623
        %vm625 = vcmask 1039360
        %v626 = vsel %vm625, %v614, %v616
        %v627 = vsel %vm625, %v618, %v620
        %v628 = vsel %vm625, %v622, %v624
        %v638 = vsel %vm625, %v616, %v614
        %v639 = vsel %vm625, %v620, %v618
        %v640 = vsel %vm625, %v624, %v622
        %v642 = vlaneseq
        %v643 = vshrl.u32 %v642, 7
        %v644 = vsub.s32 0, %v643
        %v645 = vrot.slane %v557, %v644
        %v646 = vlaneseq
        %v647 = vshrl.u32 %v646, 7
        %v648 = vsub.s32 1, %v647
        %v649 = vrot.slane %v557, %v648
        %v652 = vmul.f32 %v626, %v645
        %v653 = vmul.f32 %v638, %v649
        %v654 = vmul.f32 %v627, %v645
        %v655 = vmul.f32 %v639, %v649
        %v656 = vmul.f32 %v628, %v645
        %v657 = vmul.f32 %v640, %v649
        %659 = vset.pattern.permute.xlu0 3
        %660 = vperm.xlu0 %659, %v552
        %v661 = vpop.permute.xlu0 %660
        %664 = vset.pattern.permute.xlu0 3
        %665 = vperm.xlu0 %664, %v553
        %v666 = vpop.permute.xlu0 %665
        %669 = vset.pattern.permute.xlu0 3
        %670 = vperm.xlu0 %669, %v554
        %v671 = vpop.permute.xlu0 %670
        %v673 = vmul.f32 %v607, %v661
        %v674 = vmul.f32 %v608, %v661
        %v675 = vmul.f32 %v609, %v666
        %v676 = vmul.f32 %v610, %v666
        %v677 = vmul.f32 %v611, %v671
        %v678 = vmul.f32 %v612, %v671
        %679 = vset.pattern.permute.xlu0 4
        %680 = vperm.xlu0 %679, %v552
        %v681 = vpop.permute.xlu0 %680
        %683 = vset.pattern.permute.xlu0 4
        %684 = vperm.xlu0 %683, %v553
        %v685 = vpop.permute.xlu0 %684
        %687 = vset.pattern.permute.xlu0 4
        %688 = vperm.xlu0 %687, %v554
        %v689 = vpop.permute.xlu0 %688
        %v691 = vmul.f32 %v546, %v681
        %v692 = vmul.f32 %v547, %v681
        %v693 = vmul.f32 %v548, %v685
        %v694 = vmul.f32 %v549, %v685
        %v695 = vmul.f32 %v550, %v689
        %v696 = vmul.f32 %v551, %v689
        %v697 = vadd.f32 %v673, %v691
        %v698 = vadd.f32 %v674, %v692
        %v699 = vadd.f32 %v675, %v693
        %v700 = vadd.f32 %v676, %v694
        %v701 = vadd.f32 %v677, %v695
        %v702 = vadd.f32 %v678, %v696
        %703 = vset.pattern.permute.xlu0 5
        %704 = vperm.xlu0 %703, %v552
        %v705 = vpop.permute.xlu0 %704
        %707 = vset.pattern.permute.xlu0 5
        %708 = vperm.xlu0 %707, %v553
        %v709 = vpop.permute.xlu0 %708
        %711 = vset.pattern.permute.xlu0 5
        %712 = vperm.xlu0 %711, %v554
        %v713 = vpop.permute.xlu0 %712
        %v715 = vmul.f32 %v652, %v705
        %v716 = vmul.f32 %v653, %v705
        %v717 = vmul.f32 %v654, %v709
        %v718 = vmul.f32 %v655, %v709
        %v719 = vmul.f32 %v656, %v713
        %v720 = vmul.f32 %v657, %v713
        %v721 = vadd.f32 %v697, %v715
        %v722 = vadd.f32 %v698, %v716
        %v723 = vadd.f32 %v699, %v717
        %v724 = vadd.f32 %v700, %v718
        %v725 = vadd.f32 %v701, %v719
        %v726 = vadd.f32 %v702, %v720
        %727 = vset.pattern.permute.xlu0 0
        %728 = vperm.xlu0 %727, %v552
        %v729 = vpop.permute.xlu0 %728
        %731 = vset.pattern.permute.xlu0 0
        %732 = vperm.xlu0 %731, %v553
        %v733 = vpop.permute.xlu0 %732
        %735 = vset.pattern.permute.xlu0 0
        %736 = vperm.xlu0 %735, %v554
        %v737 = vpop.permute.xlu0 %736
        %v739 = vmul.f32 %v607, %v729
        %v740 = vmul.f32 %v608, %v729
        %v741 = vmul.f32 %v609, %v733
        %v742 = vmul.f32 %v610, %v733
        %v743 = vmul.f32 %v611, %v737
        %v744 = vmul.f32 %v612, %v737
        %745 = vset.pattern.permute.xlu0 1
        %746 = vperm.xlu0 %745, %v552
        %v747 = vpop.permute.xlu0 %746
        %749 = vset.pattern.permute.xlu0 1
        %750 = vperm.xlu0 %749, %v553
        %v751 = vpop.permute.xlu0 %750
        %753 = vset.pattern.permute.xlu0 1
        %754 = vperm.xlu0 %753, %v554
        %v755 = vpop.permute.xlu0 %754
        %v757 = vmul.f32 %v546, %v747
        %v758 = vmul.f32 %v547, %v747
        %v759 = vmul.f32 %v548, %v751
        %v760 = vmul.f32 %v549, %v751
        %v761 = vmul.f32 %v550, %v755
        %v762 = vmul.f32 %v551, %v755
        %v763 = vadd.f32 %v739, %v757
        %v764 = vadd.f32 %v740, %v758
        %v765 = vadd.f32 %v741, %v759
        %v766 = vadd.f32 %v742, %v760
        %v767 = vadd.f32 %v743, %v761
        %v768 = vadd.f32 %v744, %v762
        %769 = vset.pattern.permute.xlu0 2
        %770 = vperm.xlu0 %769, %v552
        %v771 = vpop.permute.xlu0 %770
        %773 = vset.pattern.permute.xlu0 2
        %774 = vperm.xlu0 %773, %v553
        %v775 = vpop.permute.xlu0 %774
        %777 = vset.pattern.permute.xlu0 2
        %778 = vperm.xlu0 %777, %v554
        %v779 = vpop.permute.xlu0 %778
        %v781 = vmul.f32 %v652, %v771
        %v782 = vmul.f32 %v653, %v771
        %v783 = vmul.f32 %v654, %v775
        %v784 = vmul.f32 %v655, %v775
        %v785 = vmul.f32 %v656, %v779
        %v786 = vmul.f32 %v657, %v779
        %v787 = vadd.f32 %v763, %v781
        %v788 = vadd.f32 %v764, %v782
        %v789 = vadd.f32 %v765, %v783
        %v790 = vadd.f32 %v766, %v784
        %v791 = vadd.f32 %v767, %v785
        %v792 = vadd.f32 %v768, %v786
        %796 = vrot.lane.b32.xlu0 %v788, 16
        %v797 = vpop.permute.xlu0 %796
        %798 = vrot.lane.b32.xlu0 %v790, 16
        %v799 = vpop.permute.xlu0 %798
        %800 = vrot.lane.b32.xlu0 %v792, 16
        %v801 = vpop.permute.xlu0 %800
        %808 = vrot.lane.b32.xlu0 %v787, 16
        %v809 = vpop.permute.xlu0 %808
        %810 = vrot.lane.b32.xlu0 %v789, 16
        %v811 = vpop.permute.xlu0 %810
        %812 = vrot.lane.b32.xlu0 %v791, 16
        %v813 = vpop.permute.xlu0 %812
        %vm814 = vcmask 130048
        %v815 = vsel %vm814, %v809, %v797
        %v816 = vsel %vm814, %v811, %v799
        %v817 = vsel %vm814, %v813, %v801
        %v824 = vsel %vm814, %v797, %v809
        %v825 = vsel %vm814, %v799, %v811
        %v826 = vsel %vm814, %v801, %v813
        %v828 = vlaneseq
        %v829 = vshrl.u32 %v828, 7
        %v830 = vsub.s32 0, %v829
        %v831 = vrot.slane %v559, %v830
        %v832 = vlaneseq
        %v833 = vshrl.u32 %v832, 7
        %v834 = vsub.s32 1, %v833
        %v835 = vrot.slane %v559, %v834
        %v838 = vmul.f32 %v824, %v831
        %v839 = vmul.f32 %v815, %v835
        %v840 = vmul.f32 %v825, %v831
        %v841 = vmul.f32 %v816, %v835
        %v842 = vmul.f32 %v826, %v831
        %v843 = vmul.f32 %v817, %v835
        %v844 = vadd.f32 %v721, %v838
        %v845 = vadd.f32 %v722, %v839
        %v846 = vadd.f32 %v723, %v840
        %v847 = vadd.f32 %v724, %v841
        %v848 = vadd.f32 %v725, %v842
        %v849 = vadd.f32 %v726, %v843
        %850 = vset.pattern.permute.xlu0 6
        %851 = vperm.xlu0 %850, %v552
        %v852 = vpop.permute.xlu0 %851
        %854 = vset.pattern.permute.xlu0 6
        %855 = vperm.xlu0 %854, %v553
        %v856 = vpop.permute.xlu0 %855
        %858 = vset.pattern.permute.xlu0 6
        %859 = vperm.xlu0 %858, %v554
        %v860 = vpop.permute.xlu0 %859
        %v862 = vmul.f32 %v607, %v852
        %v863 = vmul.f32 %v608, %v852
        %v864 = vmul.f32 %v609, %v856
        %v865 = vmul.f32 %v610, %v856
        %v866 = vmul.f32 %v611, %v860
        %v867 = vmul.f32 %v612, %v860
        %868 = vset.pattern.permute.xlu0 7
        %869 = vperm.xlu0 %868, %v552
        %v870 = vpop.permute.xlu0 %869
        %872 = vset.pattern.permute.xlu0 7
        %873 = vperm.xlu0 %872, %v553
        %v874 = vpop.permute.xlu0 %873
        %876 = vset.pattern.permute.xlu0 7
        %877 = vperm.xlu0 %876, %v554
        %v878 = vpop.permute.xlu0 %877
        %v880 = vmul.f32 %v546, %v870
        %v881 = vmul.f32 %v547, %v870
        %v882 = vmul.f32 %v548, %v874
        %v883 = vmul.f32 %v549, %v874
        %v884 = vmul.f32 %v550, %v878
        %v885 = vmul.f32 %v551, %v878
        %v886 = vadd.f32 %v862, %v880
        %v887 = vadd.f32 %v863, %v881
        %v888 = vadd.f32 %v864, %v882
        %v889 = vadd.f32 %v865, %v883
        %v890 = vadd.f32 %v866, %v884
        %v891 = vadd.f32 %v867, %v885
        %892 = vset.pattern.permute.xlu0 8
        %893 = vperm.xlu0 %892, %v552
        %v894 = vpop.permute.xlu0 %893
        %896 = vset.pattern.permute.xlu0 8
        %897 = vperm.xlu0 %896, %v553
        %v898 = vpop.permute.xlu0 %897
        %900 = vset.pattern.permute.xlu0 8
        %901 = vperm.xlu0 %900, %v554
        %v902 = vpop.permute.xlu0 %901
        %v904 = vmul.f32 %v652, %v894
        %v905 = vmul.f32 %v653, %v894
        %v906 = vmul.f32 %v654, %v898
        %v907 = vmul.f32 %v655, %v898
        %v908 = vmul.f32 %v656, %v902
        %v909 = vmul.f32 %v657, %v902
        %v910 = vadd.f32 %v886, %v904
        %v911 = vadd.f32 %v887, %v905
        %v912 = vadd.f32 %v888, %v906
        %v913 = vadd.f32 %v889, %v907
        %v914 = vadd.f32 %v890, %v908
        %v915 = vadd.f32 %v891, %v909
        %922 = vrot.lane.b32.xlu0 %v910, 112
        %v923 = vpop.permute.xlu0 %922
        %924 = vrot.lane.b32.xlu0 %v911, 112
        %v925 = vpop.permute.xlu0 %924
        %926 = vrot.lane.b32.xlu0 %v912, 112
        %v927 = vpop.permute.xlu0 %926
        %928 = vrot.lane.b32.xlu0 %v913, 112
        %v929 = vpop.permute.xlu0 %928
        %930 = vrot.lane.b32.xlu0 %v914, 112
        %v931 = vpop.permute.xlu0 %930
        %932 = vrot.lane.b32.xlu0 %v915, 112
        %v933 = vpop.permute.xlu0 %932
        %vm934 = vcmask 916480
        %v935 = vsel %vm934, %v923, %v925
        %v936 = vsel %vm934, %v927, %v929
        %v937 = vsel %vm934, %v931, %v933
        %v947 = vsel %vm934, %v925, %v923
        %v948 = vsel %vm934, %v929, %v927
        %v949 = vsel %vm934, %v933, %v931
        %v951 = vlaneseq
        %v952 = vshrl.u32 %v951, 7
        %v953 = vsub.s32 0, %v952
        %v954 = vrot.slane %v561, %v953
        %v955 = vlaneseq
        %v956 = vshrl.u32 %v955, 7
        %v957 = vsub.s32 1, %v956
        %v958 = vrot.slane %v561, %v957
        %v961 = vmul.f32 %v935, %v954
        %v962 = vmul.f32 %v947, %v958
        %v963 = vmul.f32 %v936, %v954
        %v964 = vmul.f32 %v948, %v958
        %v965 = vmul.f32 %v937, %v954
        %v966 = vmul.f32 %v949, %v958
        %v967 = vadd.f32 %v844, %v961
        %v968 = vadd.f32 %v845, %v962
        %v969 = vadd.f32 %v846, %v963
        %v970 = vadd.f32 %v847, %v964
        %v971 = vadd.f32 %v848, %v965
        %v972 = vadd.f32 %v849, %v966
        %v973 = vld [vmem:[%s5] sm:$0xff]
        %v974 = vld [vmem:[%s5 + $0x8] sm:$0xff]
        %v975 = vld [vmem:[%s5 + $0x10] sm:$0xff]
        %977 = vset.pattern.permute.xlu0 0
        %978 = vperm.xlu0 %977, %v973
        %v979 = vpop.permute.xlu0 %978
        %982 = vset.pattern.permute.xlu0 0
        %983 = vperm.xlu0 %982, %v974
        %v984 = vpop.permute.xlu0 %983
        %987 = vset.pattern.permute.xlu0 0
        %988 = vperm.xlu0 %987, %v975
        %v989 = vpop.permute.xlu0 %988
        %v991 = vadd.f32 %v967, %v979
        %v992 = vadd.f32 %v968, %v979
        %v993 = vadd.f32 %v969, %v984
        %v994 = vadd.f32 %v970, %v984
        %v995 = vadd.f32 %v971, %v989
        %v996 = vadd.f32 %v972, %v989
        %v997 = vmax.f32 %v991, 0.0
        %v998 = vmax.f32 %v992, 0.0
        %v999 = vmax.f32 %v993, 0.0
        %v1000 = vmax.f32 %v994, 0.0
        %v1001 = vmax.f32 %v995, 0.0
        %v1002 = vmax.f32 %v996, 0.0
        %v1003 = vld [vmem:[%s6] sm:$0xf]
        %v1004 = vld [vmem:[%s7] sm:$0xf]
        %1006 = vset.pattern.permute.xlu0 0
        %1007 = vperm.xlu0 %1006, %v1004
        %v1008 = vpop.permute.xlu0 %1007
        %1016 = vrot.lane.b32.xlu0 %v997, 112
        %v1017 = vpop.permute.xlu0 %1016
        %1018 = vrot.lane.b32.xlu0 %v998, 112
        %v1019 = vpop.permute.xlu0 %1018
        %1020 = vrot.lane.b32.xlu0 %v999, 112
        %v1021 = vpop.permute.xlu0 %1020
        %1022 = vrot.lane.b32.xlu0 %v1000, 112
        %v1023 = vpop.permute.xlu0 %1022
        %1024 = vrot.lane.b32.xlu0 %v1001, 112
        %v1025 = vpop.permute.xlu0 %1024
        %1026 = vrot.lane.b32.xlu0 %v1002, 112
        %v1027 = vpop.permute.xlu0 %1026
        %v1028 = vsel %vm934, %v1017, %v1019
        %v1029 = vsel %vm934, %v1021, %v1023
        %v1030 = vsel %vm934, %v1025, %v1027
        %vm1034 = vcmask 195584
        %v1036 = vsel %vm1034, %v1003, 0
        %1038 = vmatprep.subr.mxu0 0.0
        %1039 = vmatpush1.msra.mxu0 %v1028
        %1040 = vmatprep.subr.mxu0 0.0
        %1041 = vmatpush1.msra.mxu0 %v1029
        %1042 = vmatprep.subr.mxu0 0.0
        %1043 = vmatpush1.msra.mxu0 %v1030
        %1044 = vmatprep.subr.mxu0 0.0
        %1045 = vmatpush1.msra.mxu0 0.0
        %1046 = vmatprep.subr.mxu0 0.0
        %1047 = vmatpush1.msra.mxu0 0.0
        %1048 = vmatprep.subr.mxu0 0.0
        %1049 = vmatpush1.msra.mxu0 0.0
        %1050 = vmatprep.subr.mxu0 0.0
        %1051 = vmatpush1.msra.mxu0 0.0
        %1052 = vmatprep.subr.mxu0 0.0
        %1053 = vmatpush1.msra.mxu0 0.0
        %1054 = vmatprep.subr.mxu0 0.0
        %1055 = vmatpush1.msra.mxu0 0.0
        %1056 = vmatprep.subr.mxu0 0.0
        %1057 = vmatpush1.msra.mxu0 0.0
        %1058 = vmatprep.subr.mxu0 0.0
        %1059 = vmatpush1.msra.mxu0 0.0
        %1060 = vmatprep.subr.mxu0 0.0
        %1061 = vmatpush1.msra.mxu0 0.0
        %1062 = vmatprep.subr.mxu0 0.0
        %1063 = vmatpush1.msra.mxu0 0.0
        %1064 = vmatprep.subr.mxu0 0.0
        %1065 = vmatpush1.msra.mxu0 0.0
        %1066 = vmatprep.subr.mxu0 0.0
        %1067 = vmatpush1.msra.mxu0 0.0
        %1068 = vmatprep.subr.mxu0 0.0
        %1069 = vmatpush1.msra.mxu0 0.0
        %1070 = vmatprep.subr.mxu0 0.0
        %1071 = vmatpush1.msra.mxu0 0.0
        %1072 = vmatprep.subr.mxu0 0.0
        %1073 = vmatpush1.msra.mxu0 0.0
        %1074 = vmatprep.subr.mxu0 0.0
        %1075 = vmatpush1.msra.mxu0 0.0
        %1076 = vmatprep.subr.mxu0 0.0
        %1077 = vmatpush1.msra.mxu0 0.0
        %1078 = vmatprep.subr.mxu0 0.0
        %1079 = vmatpush1.msra.mxu0 0.0
        %1080 = vmatprep.subr.mxu0 0.0
        %1081 = vmatpush1.msra.mxu0 0.0
        %1082 = vmatprep.subr.mxu0 0.0
        %1083 = vmatpush1.msra.mxu0 0.0
        %1084 = vmatprep.subr.mxu0 0.0
        %1085 = vmatpush1.msra.mxu0 0.0
        %1086 = vmatprep.subr.mxu0 0.0
        %1087 = vmatpush1.msra.mxu0 0.0
        %1088 = vmatprep.subr.mxu0 0.0
        %1089 = vmatpush1.msra.mxu0 0.0
        %1090 = vmatprep.subr.mxu0 0.0
        %1091 = vmatpush1.msra.mxu0 0.0
        %1092 = vmatprep.subr.mxu0 0.0
        %1093 = vmatpush1.msra.mxu0 0.0
        %1094 = vmatprep.subr.mxu0 0.0
        %1095 = vmatpush1.msra.mxu0 0.0
        %1096 = vmatprep.subr.mxu0 0.0
        %1097 = vmatpush1.msra.mxu0 0.0
        %1098 = vmatprep.subr.mxu0 0.0
        %1099 = vmatpush1.msra.mxu0 0.0
        %1100 = vmatprep.subr.mxu0 0.0
        %1101 = vmatpush1.msra.mxu0 0.0
        %1102 = vmatprep.mubr.f32.mxu0 0.0
        %1103 = vmatmul.mubr.f32.gmra.mrb[0].mxu0 %v1036
        %v1104 = vpop.f32.mrb[0].mxu0
        %v1105 = vadd.f32 %v1008, %v1104
        %v1106 = vpop.f32.mrb[0].mxu0
        %1107 = vdwg.mxu0
        %v1108 = vcombine.high %v352, %v352
        %1109 = vrot.lane.b32.xlu0 %v352, 112
        %v1110 = vpop.permute.xlu0 %1109
        %1111 = vrot.lane.b32.xlu0 %v1108, 112
        %v1112 = vpop.permute.xlu0 %1111
        %v1113 = vsel %vm934, %v1110, %v1112
        %v1115 = vadd.f32 %v1105, %v1113
        %1116 = vst [vmem:[%s337] sm:$0xf] %v1115
        %s1117 = sand.u32 %s224, 1
        %s1118 = scalar_lea.sflag [#allocation3], %s1117
        %s1119 = sand.u32 %s224, 1
        %s1120 = smul.addr %s1119, 4
        %s1121 = scalar_lea.vmem [#allocation2], %s1120
        // Predicated region
        $region53: #{tpu_custom_call.1} parent=51 // pred_check
          %p1122 = pneg %p234
        $region54: #{tpu_custom_call.1} parent=51 // pred_check_branch
          %1124 = sbr.rel (%p1122) target = $region56
        $region55: #{tpu_custom_call.1} parent=51 // pred_region
          %s1126 = ssub.s32 64, 64
          %1127 = vsyncadd %s1118, %s1126
          %s1128 = smul.addr %s26, 2
          %s1129 = sadd.s32 %s27, %s1128
          %s1130 = smul.addr %s1129, 64
          %s1131 = scalar_lea.hbm %s8, %s1130
          %s1133 = sshll.u32 %s1121, 4
          %s1134 = int_to_ptr.vmem [resolvable:$true] %s1133
          %1136 = dma.vmem_to_hbm [thread:$0]  %s1134, 64, %s1131, %s1118
        $region56: #{tpu_custom_call.1} parent=51 // pred_fallthru
          _
      $region52: #{tpu_custom_call.1} parent=5 // pred_fallthru
        _
      %p1137 = scmp.le.s32.totalorder 2, %s17
      // Predicated region
      $region57: #{tpu_custom_call.1} parent=5 // pred_check
        %p1138 = pneg %p1137
      $region58: #{tpu_custom_call.1} parent=5 // pred_check_branch
        %1140 = sbr.rel (%p1138) target = $region60
      $region59: #{tpu_custom_call.1} parent=5 // pred_region
        %s1141 = ssub.s32 %s17, 2
        // Predicated region
        $region61: #{tpu_custom_call.1} parent=59 // pred_check
          %p1142 = pneg %p240
        $region62: #{tpu_custom_call.1} parent=59 // pred_check_branch
          %1144 = sbr.rel (%p1142) target = $region64
        $region63: #{tpu_custom_call.1} parent=59 // pred_region
          %s1145 = sand.u32 %s225, 1
          %s1146 = scalar_lea.sflag [#allocation3], %s1145
          %s1147 = sand.u32 %s225, 1
          %s1148 = smul.addr %s1147, 4
          %s1149 = scalar_lea.vmem [#allocation2], %s1148
          %1150 = dma.done %s1146, 64
        $region64: #{tpu_custom_call.1} parent=59 // pred_fallthru
          _
      $region60: #{tpu_custom_call.1} parent=5 // pred_fallthru
        _
    $region6: #{tpu_custom_call.1} parent=1 // loop_footer
      %s21 = sadd.s32 1, %s17
    $region7: #{tpu_custom_call.1} parent=1 // loop_footer_branch
      %16 = sbr.rel target = $region3
    $region8: #{tpu_custom_call.1} parent=1 // loop_exit
      _
    %1151 = vsyncpa [#allocation3], 1
    %s1152 = scalar_lea.sflag [#allocation3], 1
    %1153 = vsyncpa %s1152, 1

</llo_original>
